<compile_context>
chip_gen: v5e
topology: v5e:2x2
jax: 0.10.0
libtpu: 0.0.40
codegen_flags: <defaults>
</compile_context>

<pallas_src>
import functools

import jax
import jax.numpy as jnp
from jax import lax
from jax.experimental import pallas as pl
from jax.experimental.pallas import tpu as pltpu

KSIZE = 8        # conv kernel_size
PAD = 4          # conv padding
BN_EPS = 1e-5
ADAPT_OUT = 4    # AdaptiveMaxPool1d output size
CHANNELS = [1, 4, 8, 16, 32, 64]


def _adaptive_bins(length, out_size):
    return [((j * length) // out_size,
             ((j + 1) * length + out_size - 1) // out_size)
            for j in range(out_size)]


def _fused_cnn_kernel(xc_ref,
                      w1_ref, w2_ref, w3_ref, w4_ref, w5_ref,
                      s1_ref, s2_ref, s3_ref, s4_ref, s5_ref,
                      o_ref,
                      y1_buf, y2_buf, y3_buf, y4_buf,
                      p2_buf, p3_buf, p4_buf, p5_buf,
                      *, pool_dims, bins5):
    """Whole CNNlayer forward for one batch element (everything in VMEM).

    xc_ref : (1, L1_out, K)          layer-1 im2col slab (built in wrapper)
    wN_ref : (K*C_inN, C_outN)       im2col conv weight with BN scale folded in
    sN_ref : (1, C_outN)             folded shift = beta + (bias - mean)*scale
    o_ref  : (1, ADAPT_OUT, 64)      adaptive-max-pooled layer-5 output (p, c)
    yN_buf : (L_outN, C_outN)        VMEM scratch: conv output (for pooling)
    pN_buf : (L_poolN + 2*PAD, C_inN) VMEM scratch: zero-padded next-conv input
    pool_dims : static ((l_out, l_pool) for layers 1..4)
    bins5     : static adaptive-pool windows ((start, end), ...) for layer 5
    """
    w_refs = (w1_ref, w2_ref, w3_ref, w4_ref, w5_ref)
    s_refs = (s1_ref, s2_ref, s3_ref, s4_ref, s5_ref)
    y_bufs = (y1_buf, y2_buf, y3_buf, y4_buf)
    p_bufs = (p2_buf, p3_buf, p4_buf, p5_buf)

    cols = xc_ref[0]                                   # (l_out_1, K*C_in_1)

    # Layers 1..4: conv (single im2col matmul) + folded BN/bias + ReLU
    #              + MaxPool1d(2, 2), then re-pad + im2col for the next conv.
    for i in range(4):
        l_out, l_pool = pool_dims[i]
        y = jnp.dot(cols, w_refs[i][...], preferred_element_type=jnp.float32)
        y = jnp.maximum(y + s_refs[i][...], 0.0)       # (l_out, c_out)

        ybuf = y_bufs[i]
        ybuf[...] = y
        # MaxPool1d(2, 2) == elementwise max of even rows and odd rows.
        pooled = jnp.maximum(ybuf[pl.ds(0, l_pool, stride=2), :],
                             ybuf[pl.ds(1, l_pool, stride=2), :])

        # Zero-padded input of the next conv, kept resident in VMEM scratch.
        pbuf = p_bufs[i]
        pbuf[...] = jnp.zeros_like(pbuf)
        pbuf[PAD:PAD + l_pool, :] = pooled

        # im2col: concatenate the K shifted windows along the lane axis.
        nlo = l_pool + 2 * PAD - KSIZE + 1
        padded = pbuf[...]
        cols = jnp.concatenate([padded[k:k + nlo, :] for k in range(KSIZE)],
                               axis=1)                 # (nlo, K*c_out)

    # Layer 5: conv + folded BN/bias + ReLU + AdaptiveMaxPool1d(ADAPT_OUT).
    y5 = jnp.dot(cols, w_refs[4][...], preferred_element_type=jnp.float32)
    y5 = jnp.maximum(y5 + s_refs[4][...], 0.0)         # (l_out_5, 64)
    pooled5 = jnp.concatenate(
        [jnp.max(y5[s:e, :], axis=0, keepdims=True) for (s, e) in bins5],
        axis=0)                                        # (ADAPT_OUT, 64)
    o_ref[0] = pooled5                                 # single store per element


def cnnlayer_forward(x_ncl, params):
    """x_ncl: (B, 1, L) PyTorch NCL layout -> (B, 256).  Eval-mode forward."""
    B, c_in0, L = x_ncl.shape
    assert c_in0 == CHANNELS[0]
    x = jnp.transpose(x_ncl, (0, 2, 1)).astype(jnp.float32)      # (B, L, 1)

    # Static per-layer geometry (conv output length / pooled length).
    pool_dims = []
    l = L
    for _ in range(4):
        l_out = l + 2 * PAD - KSIZE + 1
        l_pool = l_out // 2
        pool_dims.append((l_out, l_pool))
        l = l_pool
    l5_out = l + 2 * PAD - KSIZE + 1
    bins5 = tuple(_adaptive_bins(l5_out, ADAPT_OUT))
    assert all(0 <= s < e <= l5_out for s, e in bins5)

    # Layer-1 im2col built once in XLA on the tiny raw input (C_in = 1).
    l1_out = pool_dims[0][0]
    xp = jnp.pad(x[..., 0], ((0, 0), (PAD, PAD)))                # (B, L + 2*PAD)
    xc = jnp.stack([xp[:, k:k + l1_out] for k in range(KSIZE)],
                   axis=-1)                                      # (B, l1_out, K)

    # Fold conv bias + eval-mode BatchNorm into im2col weights / shifts:
    #   (cols @ W + b) * scale + (beta - mean*scale)
    #     == cols @ (W * scale) + (beta + (b - mean) * scale)
    ws, ss, c_outs = [], [], []
    for p in params:
        c_out, c_in, k = p["w"].shape
        w_r = jnp.transpose(p["w"], (2, 1, 0)).reshape(k * c_in, c_out)
        scale = p["gamma"] / jnp.sqrt(p["var"] + BN_EPS)
        ws.append(w_r * scale[None, :])
        ss.append((p["beta"] + (p["b"] - p["mean"]) * scale).reshape(1, c_out))
        c_outs.append(c_out)

    kern = functools.partial(_fused_cnn_kernel,
                             pool_dims=tuple(pool_dims), bins5=bins5)

    in_specs = ([pl.BlockSpec((1, l1_out, KSIZE), lambda b: (b, 0, 0))] +
                [pl.BlockSpec(w.shape, lambda b: (0, 0)) for w in ws] +
                [pl.BlockSpec(s.shape, lambda b: (0, 0)) for s in ss])

    scratch_shapes = (
        [pltpu.VMEM((pool_dims[i][0], c_outs[i]), jnp.float32)
         for i in range(4)] +
        [pltpu.VMEM((pool_dims[i][1] + 2 * PAD, c_outs[i]), jnp.float32)
         for i in range(4)])

    out = pl.pallas_call(
        kern,
        out_shape=jax.ShapeDtypeStruct((B, ADAPT_OUT, c_outs[4]), jnp.float32),
        grid=(B,),
        in_specs=in_specs,
        out_specs=pl.BlockSpec((1, ADAPT_OUT, c_outs[4]), lambda b: (b, 0, 0)),
        scratch_shapes=scratch_shapes,
        compiler_params=pltpu.CompilerParams(
            dimension_semantics=("parallel",)),
    )(xc, *ws, *ss)

    # nn.Flatten on (B, C=64, P=4): flat index = c * ADAPT_OUT + p.
    # Only 256 floats per batch element, so this transpose/reshape is left to
    # XLA (not a store-path lever at this size).
    # TODO(synk): training-mode Dropout RNG mask / batch-stat BN not modeled.
    return jnp.transpose(out, (0, 2, 1)).reshape(B, -1)


def ref_forward(x_ncl, params):
    """Pure-JAX (XLA) reference of the same eval-mode forward, NCL layout."""
    y = x_ncl.astype(jnp.float32)
    for i, p in enumerate(params):
        y = lax.conv_general_dilated(y, p["w"], (1,), [(PAD, PAD)],
                                     dimension_numbers=("NCH", "OIH", "NCH"))
        y = y + p["b"][None, :, None]
        sc = p["gamma"] / jnp.sqrt(p["var"] + BN_EPS)
        sh = p["beta"] - p["mean"] * sc
        y = jnp.maximum(y * sc[None, :, None] + sh[None, :, None], 0.0)
        L = y.shape[-1]
        if i < 4:
            lp = L // 2
            y = y[..., :2 * lp].reshape(y.shape[0], y.shape[1], lp, 2).max(-1)
        else:
            bins = _adaptive_bins(L, ADAPT_OUT)
            y = jnp.stack([y[..., s:e].max(-1) for s, e in bins], axis=-1)
    return y.reshape(y.shape[0], -1)


def init_params(key):
    params = []
    for i in range(5):
        c_in, c_out = CHANNELS[i], CHANNELS[i + 1]
        key, k1, k2, k3, k4, k5, k6 = jax.random.split(key, 7)
        bound = 1.0 / float(c_in * KSIZE) ** 0.5
        params.append(dict(
            w=jax.random.uniform(k1, (c_out, c_in, KSIZE), jnp.float32, -bound, bound),
            b=jax.random.uniform(k2, (c_out,), jnp.float32, -bound, bound),
            gamma=jax.random.uniform(k3, (c_out,), jnp.float32, 0.5, 1.5),
            beta=0.1 * jax.random.normal(k4, (c_out,), jnp.float32),
            mean=0.1 * jax.random.normal(k5, (c_out,), jnp.float32),
            var=jax.random.uniform(k6, (c_out,), jnp.float32, 0.5, 1.5),
        ))
    return params


if __name__ == "__main__":
    key = jax.random.PRNGKey(0)
    kx, kp = jax.random.split(key)
    B, L = 2, 64
    x = jax.random.normal(kx, (B, 1, L), jnp.float32)   # (batch, in_channel=1, length)
    params = init_params(kp)

    out = jax.jit(cnnlayer_forward)(x, params)
    out = jax.block_until_ready(out)
    assert out.shape == (B, 256), out.shape

    ref = ref_forward(x, params)
    assert jnp.allclose(out, ref, atol=1e-3, rtol=1e-3), \
        float(jnp.max(jnp.abs(out - ref)))

    print("KERNEL_OK")
</pallas_src>

<mosaic_0001>
module attributes {stable_mosaic.version = 11 : i64} {
  func.func @_fused_cnn_kernel(%arg0: i32, %arg1: memref<1x65x8xf32, #tpu.memory_space<vmem>>, %arg2: memref<8x4xf32, #tpu.memory_space<vmem>>, %arg3: memref<32x8xf32, #tpu.memory_space<vmem>>, %arg4: memref<64x16xf32, #tpu.memory_space<vmem>>, %arg5: memref<128x32xf32, #tpu.memory_space<vmem>>, %arg6: memref<256x64xf32, #tpu.memory_space<vmem>>, %arg7: memref<1x4xf32, #tpu.memory_space<vmem>>, %arg8: memref<1x8xf32, #tpu.memory_space<vmem>>, %arg9: memref<1x16xf32, #tpu.memory_space<vmem>>, %arg10: memref<1x32xf32, #tpu.memory_space<vmem>>, %arg11: memref<1x64xf32, #tpu.memory_space<vmem>>, %arg12: memref<1x4x64xf32, #tpu.memory_space<vmem>>, %arg13: memref<65x4xf32, #tpu.memory_space<vmem>>, %arg14: memref<33x8xf32, #tpu.memory_space<vmem>>, %arg15: memref<17x16xf32, #tpu.memory_space<vmem>>, %arg16: memref<9x32xf32, #tpu.memory_space<vmem>>, %arg17: memref<40x4xf32, #tpu.memory_space<vmem>>, %arg18: memref<24x8xf32, #tpu.memory_space<vmem>>, %arg19: memref<16x16xf32, #tpu.memory_space<vmem>>, %arg20: memref<12x32xf32, #tpu.memory_space<vmem>>) attributes {dimension_semantics = [#tpu.dimension_semantics<parallel>], iteration_bounds = array<i64: 2>, scalar_prefetch = 0 : i64, scratch_operands = 8 : i64, tpu.core_type = #tpu.core_type<tc>, window_params = [{transform_indices = @transform_0, window_bounds = array<i64: 1, 65, 8>}, {pipeline_mode = #tpu.pipeline_mode<synchronous>, transform_indices = @transform_1, window_bounds = array<i64: 8, 4>}, {pipeline_mode = #tpu.pipeline_mode<synchronous>, transform_indices = @transform_2, window_bounds = array<i64: 32, 8>}, {pipeline_mode = #tpu.pipeline_mode<synchronous>, transform_indices = @transform_3, window_bounds = array<i64: 64, 16>}, {pipeline_mode = #tpu.pipeline_mode<synchronous>, transform_indices = @transform_4, window_bounds = array<i64: 128, 32>}, {pipeline_mode = #tpu.pipeline_mode<synchronous>, transform_indices = @transform_5, window_bounds = array<i64: 256, 64>}, {pipeline_mode = #tpu.pipeline_mode<synchronous>, transform_indices = @transform_6, window_bounds = array<i64: 1, 4>}, {pipeline_mode = #tpu.pipeline_mode<synchronous>, transform_indices = @transform_7, window_bounds = array<i64: 1, 8>}, {pipeline_mode = #tpu.pipeline_mode<synchronous>, transform_indices = @transform_8, window_bounds = array<i64: 1, 16>}, {pipeline_mode = #tpu.pipeline_mode<synchronous>, transform_indices = @transform_9, window_bounds = array<i64: 1, 32>}, {pipeline_mode = #tpu.pipeline_mode<synchronous>, transform_indices = @transform_10, window_bounds = array<i64: 1, 64>}, {transform_indices = @transform_11, window_bounds = array<i64: 1, 4, 64>}]} {
    %c0 = arith.constant 0 : index
    %c0_0 = arith.constant 0 : index
    %c0_1 = arith.constant 0 : index
    %0 = vector.load %arg1[%c0, %c0_0, %c0_1] : memref<1x65x8xf32, #tpu.memory_space<vmem>>, vector<1x65x8xf32>
    %1 = vector.shape_cast %0 : vector<1x65x8xf32> to vector<65x8xf32>
    %c0_2 = arith.constant 0 : index
    %c0_3 = arith.constant 0 : index
    %2 = vector.load %arg2[%c0_2, %c0_3] : memref<8x4xf32, #tpu.memory_space<vmem>>, vector<8x4xf32>
    %cst = arith.constant dense<0.000000e+00> : vector<65x4xf32>
    %3 = tpu.matmul %1, %2, %cst {dimension_numbers = #tpu.dot_dimension_numbers<[1], [0], [0], [1], [0, 0, 1, 1], [], []>} : vector<65x8xf32>, vector<8x4xf32>, vector<65x4xf32> -> vector<65x4xf32>
    %c0_4 = arith.constant 0 : index
    %c0_5 = arith.constant 0 : index
    %4 = vector.load %arg7[%c0_4, %c0_5] : memref<1x4xf32, #tpu.memory_space<vmem>>, vector<1x4xf32>
    %5 = vector.broadcast %4 : vector<1x4xf32> to vector<65x4xf32>
    %6 = arith.addf %3, %5 : vector<65x4xf32>
    %cst_6 = arith.constant 0.000000e+00 : f32
    %7 = vector.broadcast %cst_6 : f32 to vector<65x4xf32>
    %8 = arith.maximumf %6, %7 : vector<65x4xf32>
    %c0_7 = arith.constant 0 : index
    %c0_8 = arith.constant 0 : index
    %9 = vector.load %arg13[%c0_7, %c0_8] : memref<65x4xf32, #tpu.memory_space<vmem>>, vector<65x4xf32>
    tpu.vector_store %arg13[%c0_7, %c0_8], %8 {strides = array<i32>} : memref<65x4xf32, #tpu.memory_space<vmem>>, vector<65x4xf32>,
    %c0_9 = arith.constant 0 : index
    %c0_10 = arith.constant 0 : index
    %10 = tpu.strided_load %arg13[%c0_9, %c0_10] {strides = array<i32: 2, 1>} : memref<65x4xf32, #tpu.memory_space<vmem>>, vector<32x4xf32>
    %c1 = arith.constant 1 : index
    %c0_11 = arith.constant 0 : index
    %11 = tpu.strided_load %arg13[%c1, %c0_11] {strides = array<i32: 2, 1>} : memref<65x4xf32, #tpu.memory_space<vmem>>, vector<32x4xf32>
    %12 = arith.maximumf %10, %11 : vector<32x4xf32>
    %cst_12 = arith.constant 0.000000e+00 : f32
    %13 = vector.broadcast %cst_12 : f32 to vector<40x4xf32>
    %c0_13 = arith.constant 0 : index
    %c0_14 = arith.constant 0 : index
    %14 = vector.load %arg17[%c0_13, %c0_14] : memref<40x4xf32, #tpu.memory_space<vmem>>, vector<40x4xf32>
    tpu.vector_store %arg17[%c0_13, %c0_14], %13 {strides = array<i32>} : memref<40x4xf32, #tpu.memory_space<vmem>>, vector<40x4xf32>,
    %c4 = arith.constant 4 : index
    %c0_15 = arith.constant 0 : index
    %15 = vector.load %arg17[%c4, %c0_15] : memref<40x4xf32, #tpu.memory_space<vmem>>, vector<32x4xf32>
    tpu.vector_store %arg17[%c4, %c0_15], %12 {strides = array<i32>} : memref<40x4xf32, #tpu.memory_space<vmem>>, vector<32x4xf32>,
    %c0_16 = arith.constant 0 : index
    %c0_17 = arith.constant 0 : index
    %16 = vector.load %arg17[%c0_16, %c0_17] : memref<40x4xf32, #tpu.memory_space<vmem>>, vector<40x4xf32>
    %17 = vector.extract_strided_slice %16 {offsets = [0, 0], sizes = [33, 4], strides = [1, 1]} : vector<40x4xf32> to vector<33x4xf32>
    %18 = vector.extract_strided_slice %16 {offsets = [1, 0], sizes = [33, 4], strides = [1, 1]} : vector<40x4xf32> to vector<33x4xf32>
    %19 = vector.extract_strided_slice %16 {offsets = [2, 0], sizes = [33, 4], strides = [1, 1]} : vector<40x4xf32> to vector<33x4xf32>
    %20 = vector.extract_strided_slice %16 {offsets = [3, 0], sizes = [33, 4], strides = [1, 1]} : vector<40x4xf32> to vector<33x4xf32>
    %21 = vector.extract_strided_slice %16 {offsets = [4, 0], sizes = [33, 4], strides = [1, 1]} : vector<40x4xf32> to vector<33x4xf32>
    %22 = vector.extract_strided_slice %16 {offsets = [5, 0], sizes = [33, 4], strides = [1, 1]} : vector<40x4xf32> to vector<33x4xf32>
    %23 = vector.extract_strided_slice %16 {offsets = [6, 0], sizes = [33, 4], strides = [1, 1]} : vector<40x4xf32> to vector<33x4xf32>
    %24 = vector.extract_strided_slice %16 {offsets = [7, 0], sizes = [33, 4], strides = [1, 1]} : vector<40x4xf32> to vector<33x4xf32>
    %25 = tpu.concatenate %17, %18, %19, %20, %21, %22, %23, %24 in 1 : vector<33x4xf32>, vector<33x4xf32>, vector<33x4xf32>, vector<33x4xf32>, vector<33x4xf32>, vector<33x4xf32>, vector<33x4xf32>, vector<33x4xf32> -> vector<33x32xf32>
    %c0_18 = arith.constant 0 : index
    %c0_19 = arith.constant 0 : index
    %26 = vector.load %arg3[%c0_18, %c0_19] : memref<32x8xf32, #tpu.memory_space<vmem>>, vector<32x8xf32>
    %cst_20 = arith.constant dense<0.000000e+00> : vector<33x8xf32>
    %27 = tpu.matmul %25, %26, %cst_20 {dimension_numbers = #tpu.dot_dimension_numbers<[1], [0], [0], [1], [0, 0, 1, 1], [], []>} : vector<33x32xf32>, vector<32x8xf32>, vector<33x8xf32> -> vector<33x8xf32>
    %c0_21 = arith.constant 0 : index
    %c0_22 = arith.constant 0 : index
    %28 = vector.load %arg8[%c0_21, %c0_22] : memref<1x8xf32, #tpu.memory_space<vmem>>, vector<1x8xf32>
    %29 = vector.broadcast %28 : vector<1x8xf32> to vector<33x8xf32>
    %30 = arith.addf %27, %29 : vector<33x8xf32>
    %cst_23 = arith.constant 0.000000e+00 : f32
    %31 = vector.broadcast %cst_23 : f32 to vector<33x8xf32>
    %32 = arith.maximumf %30, %31 : vector<33x8xf32>
    %c0_24 = arith.constant 0 : index
    %c0_25 = arith.constant 0 : index
    %33 = vector.load %arg14[%c0_24, %c0_25] : memref<33x8xf32, #tpu.memory_space<vmem>>, vector<33x8xf32>
    tpu.vector_store %arg14[%c0_24, %c0_25], %32 {strides = array<i32>} : memref<33x8xf32, #tpu.memory_space<vmem>>, vector<33x8xf32>,
    %c0_26 = arith.constant 0 : index
    %c0_27 = arith.constant 0 : index
    %34 = tpu.strided_load %arg14[%c0_26, %c0_27] {strides = array<i32: 2, 1>} : memref<33x8xf32, #tpu.memory_space<vmem>>, vector<16x8xf32>
    %c1_28 = arith.constant 1 : index
    %c0_29 = arith.constant 0 : index
    %35 = tpu.strided_load %arg14[%c1_28, %c0_29] {strides = array<i32: 2, 1>} : memref<33x8xf32, #tpu.memory_space<vmem>>, vector<16x8xf32>
    %36 = arith.maximumf %34, %35 : vector<16x8xf32>
    %cst_30 = arith.constant 0.000000e+00 : f32
    %37 = vector.broadcast %cst_30 : f32 to vector<24x8xf32>
    %c0_31 = arith.constant 0 : index
    %c0_32 = arith.constant 0 : index
    %38 = vector.load %arg18[%c0_31, %c0_32] : memref<24x8xf32, #tpu.memory_space<vmem>>, vector<24x8xf32>
    tpu.vector_store %arg18[%c0_31, %c0_32], %37 {strides = array<i32>} : memref<24x8xf32, #tpu.memory_space<vmem>>, vector<24x8xf32>,
    %c4_33 = arith.constant 4 : index
    %c0_34 = arith.constant 0 : index
    %39 = vector.load %arg18[%c4_33, %c0_34] : memref<24x8xf32, #tpu.memory_space<vmem>>, vector<16x8xf32>
    tpu.vector_store %arg18[%c4_33, %c0_34], %36 {strides = array<i32>} : memref<24x8xf32, #tpu.memory_space<vmem>>, vector<16x8xf32>,
    %c0_35 = arith.constant 0 : index
    %c0_36 = arith.constant 0 : index
    %40 = vector.load %arg18[%c0_35, %c0_36] : memref<24x8xf32, #tpu.memory_space<vmem>>, vector<24x8xf32>
    %41 = vector.extract_strided_slice %40 {offsets = [0, 0], sizes = [17, 8], strides = [1, 1]} : vector<24x8xf32> to vector<17x8xf32>
    %42 = vector.extract_strided_slice %40 {offsets = [1, 0], sizes = [17, 8], strides = [1, 1]} : vector<24x8xf32> to vector<17x8xf32>
    %43 = vector.extract_strided_slice %40 {offsets = [2, 0], sizes = [17, 8], strides = [1, 1]} : vector<24x8xf32> to vector<17x8xf32>
    %44 = vector.extract_strided_slice %40 {offsets = [3, 0], sizes = [17, 8], strides = [1, 1]} : vector<24x8xf32> to vector<17x8xf32>
    %45 = vector.extract_strided_slice %40 {offsets = [4, 0], sizes = [17, 8], strides = [1, 1]} : vector<24x8xf32> to vector<17x8xf32>
    %46 = vector.extract_strided_slice %40 {offsets = [5, 0], sizes = [17, 8], strides = [1, 1]} : vector<24x8xf32> to vector<17x8xf32>
    %47 = vector.extract_strided_slice %40 {offsets = [6, 0], sizes = [17, 8], strides = [1, 1]} : vector<24x8xf32> to vector<17x8xf32>
    %48 = vector.extract_strided_slice %40 {offsets = [7, 0], sizes = [17, 8], strides = [1, 1]} : vector<24x8xf32> to vector<17x8xf32>
    %49 = tpu.concatenate %41, %42, %43, %44, %45, %46, %47, %48 in 1 : vector<17x8xf32>, vector<17x8xf32>, vector<17x8xf32>, vector<17x8xf32>, vector<17x8xf32>, vector<17x8xf32>, vector<17x8xf32>, vector<17x8xf32> -> vector<17x64xf32>
    %c0_37 = arith.constant 0 : index
    %c0_38 = arith.constant 0 : index
    %50 = vector.load %arg4[%c0_37, %c0_38] : memref<64x16xf32, #tpu.memory_space<vmem>>, vector<64x16xf32>
    %cst_39 = arith.constant dense<0.000000e+00> : vector<17x16xf32>
    %51 = tpu.matmul %49, %50, %cst_39 {dimension_numbers = #tpu.dot_dimension_numbers<[1], [0], [0], [1], [0, 0, 1, 1], [], []>} : vector<17x64xf32>, vector<64x16xf32>, vector<17x16xf32> -> vector<17x16xf32>
    %c0_40 = arith.constant 0 : index
    %c0_41 = arith.constant 0 : index
    %52 = vector.load %arg9[%c0_40, %c0_41] : memref<1x16xf32, #tpu.memory_space<vmem>>, vector<1x16xf32>
    %53 = vector.broadcast %52 : vector<1x16xf32> to vector<17x16xf32>
    %54 = arith.addf %51, %53 : vector<17x16xf32>
    %cst_42 = arith.constant 0.000000e+00 : f32
    %55 = vector.broadcast %cst_42 : f32 to vector<17x16xf32>
    %56 = arith.maximumf %54, %55 : vector<17x16xf32>
    %c0_43 = arith.constant 0 : index
    %c0_44 = arith.constant 0 : index
    %57 = vector.load %arg15[%c0_43, %c0_44] : memref<17x16xf32, #tpu.memory_space<vmem>>, vector<17x16xf32>
    tpu.vector_store %arg15[%c0_43, %c0_44], %56 {strides = array<i32>} : memref<17x16xf32, #tpu.memory_space<vmem>>, vector<17x16xf32>,
    %c0_45 = arith.constant 0 : index
    %c0_46 = arith.constant 0 : index
    %58 = tpu.strided_load %arg15[%c0_45, %c0_46] {strides = array<i32: 2, 1>} : memref<17x16xf32, #tpu.memory_space<vmem>>, vector<8x16xf32>
    %c1_47 = arith.constant 1 : index
    %c0_48 = arith.constant 0 : index
    %59 = tpu.strided_load %arg15[%c1_47, %c0_48] {strides = array<i32: 2, 1>} : memref<17x16xf32, #tpu.memory_space<vmem>>, vector<8x16xf32>
    %60 = arith.maximumf %58, %59 : vector<8x16xf32>
    %cst_49 = arith.constant 0.000000e+00 : f32
    %61 = vector.broadcast %cst_49 : f32 to vector<16x16xf32>
    %c0_50 = arith.constant 0 : index
    %c0_51 = arith.constant 0 : index
    %62 = vector.load %arg19[%c0_50, %c0_51] : memref<16x16xf32, #tpu.memory_space<vmem>>, vector<16x16xf32>
    tpu.vector_store %arg19[%c0_50, %c0_51], %61 {strides = array<i32>} : memref<16x16xf32, #tpu.memory_space<vmem>>, vector<16x16xf32>,
    %c4_52 = arith.constant 4 : index
    %c0_53 = arith.constant 0 : index
    %63 = vector.load %arg19[%c4_52, %c0_53] : memref<16x16xf32, #tpu.memory_space<vmem>>, vector<8x16xf32>
    tpu.vector_store %arg19[%c4_52, %c0_53], %60 {strides = array<i32>} : memref<16x16xf32, #tpu.memory_space<vmem>>, vector<8x16xf32>,
    %c0_54 = arith.constant 0 : index
    %c0_55 = arith.constant 0 : index
    %64 = vector.load %arg19[%c0_54, %c0_55] : memref<16x16xf32, #tpu.memory_space<vmem>>, vector<16x16xf32>
    %65 = vector.extract_strided_slice %64 {offsets = [0, 0], sizes = [9, 16], strides = [1, 1]} : vector<16x16xf32> to vector<9x16xf32>
    %66 = vector.extract_strided_slice %64 {offsets = [1, 0], sizes = [9, 16], strides = [1, 1]} : vector<16x16xf32> to vector<9x16xf32>
    %67 = vector.extract_strided_slice %64 {offsets = [2, 0], sizes = [9, 16], strides = [1, 1]} : vector<16x16xf32> to vector<9x16xf32>
    %68 = vector.extract_strided_slice %64 {offsets = [3, 0], sizes = [9, 16], strides = [1, 1]} : vector<16x16xf32> to vector<9x16xf32>
    %69 = vector.extract_strided_slice %64 {offsets = [4, 0], sizes = [9, 16], strides = [1, 1]} : vector<16x16xf32> to vector<9x16xf32>
    %70 = vector.extract_strided_slice %64 {offsets = [5, 0], sizes = [9, 16], strides = [1, 1]} : vector<16x16xf32> to vector<9x16xf32>
    %71 = vector.extract_strided_slice %64 {offsets = [6, 0], sizes = [9, 16], strides = [1, 1]} : vector<16x16xf32> to vector<9x16xf32>
    %72 = vector.extract_strided_slice %64 {offsets = [7, 0], sizes = [9, 16], strides = [1, 1]} : vector<16x16xf32> to vector<9x16xf32>
    %73 = tpu.concatenate %65, %66, %67, %68, %69, %70, %71, %72 in 1 : vector<9x16xf32>, vector<9x16xf32>, vector<9x16xf32>, vector<9x16xf32>, vector<9x16xf32>, vector<9x16xf32>, vector<9x16xf32>, vector<9x16xf32> -> vector<9x128xf32>
    %c0_56 = arith.constant 0 : index
    %c0_57 = arith.constant 0 : index
    %74 = vector.load %arg5[%c0_56, %c0_57] : memref<128x32xf32, #tpu.memory_space<vmem>>, vector<128x32xf32>
    %cst_58 = arith.constant dense<0.000000e+00> : vector<9x32xf32>
    %75 = tpu.matmul %73, %74, %cst_58 {dimension_numbers = #tpu.dot_dimension_numbers<[1], [0], [0], [1], [0, 0, 1, 1], [], []>} : vector<9x128xf32>, vector<128x32xf32>, vector<9x32xf32> -> vector<9x32xf32>
    %c0_59 = arith.constant 0 : index
    %c0_60 = arith.constant 0 : index
    %76 = vector.load %arg10[%c0_59, %c0_60] : memref<1x32xf32, #tpu.memory_space<vmem>>, vector<1x32xf32>
    %77 = vector.broadcast %76 : vector<1x32xf32> to vector<9x32xf32>
    %78 = arith.addf %75, %77 : vector<9x32xf32>
    %cst_61 = arith.constant 0.000000e+00 : f32
    %79 = vector.broadcast %cst_61 : f32 to vector<9x32xf32>
    %80 = arith.maximumf %78, %79 : vector<9x32xf32>
    %c0_62 = arith.constant 0 : index
    %c0_63 = arith.constant 0 : index
    %81 = vector.load %arg16[%c0_62, %c0_63] : memref<9x32xf32, #tpu.memory_space<vmem>>, vector<9x32xf32>
    tpu.vector_store %arg16[%c0_62, %c0_63], %80 {strides = array<i32>} : memref<9x32xf32, #tpu.memory_space<vmem>>, vector<9x32xf32>,
    %c0_64 = arith.constant 0 : index
    %c0_65 = arith.constant 0 : index
    %82 = tpu.strided_load %arg16[%c0_64, %c0_65] {strides = array<i32: 2, 1>} : memref<9x32xf32, #tpu.memory_space<vmem>>, vector<4x32xf32>
    %c1_66 = arith.constant 1 : index
    %c0_67 = arith.constant 0 : index
    %83 = tpu.strided_load %arg16[%c1_66, %c0_67] {strides = array<i32: 2, 1>} : memref<9x32xf32, #tpu.memory_space<vmem>>, vector<4x32xf32>
    %84 = arith.maximumf %82, %83 : vector<4x32xf32>
    %cst_68 = arith.constant 0.000000e+00 : f32
    %85 = vector.broadcast %cst_68 : f32 to vector<12x32xf32>
    %c0_69 = arith.constant 0 : index
    %c0_70 = arith.constant 0 : index
    %86 = vector.load %arg20[%c0_69, %c0_70] : memref<12x32xf32, #tpu.memory_space<vmem>>, vector<12x32xf32>
    tpu.vector_store %arg20[%c0_69, %c0_70], %85 {strides = array<i32>} : memref<12x32xf32, #tpu.memory_space<vmem>>, vector<12x32xf32>,
    %c4_71 = arith.constant 4 : index
    %c0_72 = arith.constant 0 : index
    %87 = vector.load %arg20[%c4_71, %c0_72] : memref<12x32xf32, #tpu.memory_space<vmem>>, vector<4x32xf32>
    tpu.vector_store %arg20[%c4_71, %c0_72], %84 {strides = array<i32>} : memref<12x32xf32, #tpu.memory_space<vmem>>, vector<4x32xf32>,
    %c0_73 = arith.constant 0 : index
    %c0_74 = arith.constant 0 : index
    %88 = vector.load %arg20[%c0_73, %c0_74] : memref<12x32xf32, #tpu.memory_space<vmem>>, vector<12x32xf32>
    %89 = vector.extract_strided_slice %88 {offsets = [0, 0], sizes = [5, 32], strides = [1, 1]} : vector<12x32xf32> to vector<5x32xf32>
    %90 = vector.extract_strided_slice %88 {offsets = [1, 0], sizes = [5, 32], strides = [1, 1]} : vector<12x32xf32> to vector<5x32xf32>
    %91 = vector.extract_strided_slice %88 {offsets = [2, 0], sizes = [5, 32], strides = [1, 1]} : vector<12x32xf32> to vector<5x32xf32>
    %92 = vector.extract_strided_slice %88 {offsets = [3, 0], sizes = [5, 32], strides = [1, 1]} : vector<12x32xf32> to vector<5x32xf32>
    %93 = vector.extract_strided_slice %88 {offsets = [4, 0], sizes = [5, 32], strides = [1, 1]} : vector<12x32xf32> to vector<5x32xf32>
    %94 = vector.extract_strided_slice %88 {offsets = [5, 0], sizes = [5, 32], strides = [1, 1]} : vector<12x32xf32> to vector<5x32xf32>
    %95 = vector.extract_strided_slice %88 {offsets = [6, 0], sizes = [5, 32], strides = [1, 1]} : vector<12x32xf32> to vector<5x32xf32>
    %96 = vector.extract_strided_slice %88 {offsets = [7, 0], sizes = [5, 32], strides = [1, 1]} : vector<12x32xf32> to vector<5x32xf32>
    %97 = tpu.concatenate %89, %90, %91, %92, %93, %94, %95, %96 in 1 : vector<5x32xf32>, vector<5x32xf32>, vector<5x32xf32>, vector<5x32xf32>, vector<5x32xf32>, vector<5x32xf32>, vector<5x32xf32>, vector<5x32xf32> -> vector<5x256xf32>
    %c0_75 = arith.constant 0 : index
    %c0_76 = arith.constant 0 : index
    %98 = vector.load %arg6[%c0_75, %c0_76] : memref<256x64xf32, #tpu.memory_space<vmem>>, vector<256x64xf32>
    %cst_77 = arith.constant dense<0.000000e+00> : vector<5x64xf32>
    %99 = tpu.matmul %97, %98, %cst_77 {dimension_numbers = #tpu.dot_dimension_numbers<[1], [0], [0], [1], [0, 0, 1, 1], [], []>} : vector<5x256xf32>, vector<256x64xf32>, vector<5x64xf32> -> vector<5x64xf32>
    %c0_78 = arith.constant 0 : index
    %c0_79 = arith.constant 0 : index
    %100 = vector.load %arg11[%c0_78, %c0_79] : memref<1x64xf32, #tpu.memory_space<vmem>>, vector<1x64xf32>
    %101 = vector.broadcast %100 : vector<1x64xf32> to vector<5x64xf32>
    %102 = arith.addf %99, %101 : vector<5x64xf32>
    %cst_80 = arith.constant 0.000000e+00 : f32
    %103 = vector.broadcast %cst_80 : f32 to vector<5x64xf32>
    %104 = arith.maximumf %102, %103 : vector<5x64xf32>
    %105 = vector.extract_strided_slice %104 {offsets = [0, 0], sizes = [2, 64], strides = [1, 1]} : vector<5x64xf32> to vector<2x64xf32>
    %cst_81 = arith.constant dense<0xFF800000> : vector<64xf32>
    %106 = vector.multi_reduction <maximumf>, %105, %cst_81 [0] : vector<2x64xf32> to vector<64xf32>
    %107 = vector.shape_cast %106 : vector<64xf32> to vector<1x64xf32>
    %108 = vector.extract_strided_slice %104 {offsets = [1, 0], sizes = [2, 64], strides = [1, 1]} : vector<5x64xf32> to vector<2x64xf32>
    %cst_82 = arith.constant dense<0xFF800000> : vector<64xf32>
    %109 = vector.multi_reduction <maximumf>, %108, %cst_82 [0] : vector<2x64xf32> to vector<64xf32>
    %110 = vector.shape_cast %109 : vector<64xf32> to vector<1x64xf32>
    %111 = vector.extract_strided_slice %104 {offsets = [2, 0], sizes = [2, 64], strides = [1, 1]} : vector<5x64xf32> to vector<2x64xf32>
    %cst_83 = arith.constant dense<0xFF800000> : vector<64xf32>
    %112 = vector.multi_reduction <maximumf>, %111, %cst_83 [0] : vector<2x64xf32> to vector<64xf32>
    %113 = vector.shape_cast %112 : vector<64xf32> to vector<1x64xf32>
    %114 = vector.extract_strided_slice %104 {offsets = [3, 0], sizes = [2, 64], strides = [1, 1]} : vector<5x64xf32> to vector<2x64xf32>
    %cst_84 = arith.constant dense<0xFF800000> : vector<64xf32>
    %115 = vector.multi_reduction <maximumf>, %114, %cst_84 [0] : vector<2x64xf32> to vector<64xf32>
    %116 = vector.shape_cast %115 : vector<64xf32> to vector<1x64xf32>
    %117 = tpu.concatenate %107, %110, %113, %116 in 0 : vector<1x64xf32>, vector<1x64xf32>, vector<1x64xf32>, vector<1x64xf32> -> vector<4x64xf32>
    %c0_85 = arith.constant 0 : index
    %c0_86 = arith.constant 0 : index
    %c0_87 = arith.constant 0 : index
    %118 = vector.load %arg12[%c0_85, %c0_86, %c0_87] : memref<1x4x64xf32, #tpu.memory_space<vmem>>, vector<1x4x64xf32>
    %119 = vector.shape_cast %118 : vector<1x4x64xf32> to vector<4x64xf32>
    %120 = vector.shape_cast %117 : vector<4x64xf32> to vector<1x4x64xf32>
    tpu.vector_store %arg12[%c0_85, %c0_86, %c0_87], %120 {strides = array<i32>} : memref<1x4x64xf32, #tpu.memory_space<vmem>>, vector<1x4x64xf32>,
    return
  }
  func.func @transform_0(%arg0: i32) -> (i32, i32, i32) {
    %c0_i32 = arith.constant 0 : i32
    %c0_i32_0 = arith.constant 0 : i32
    %c0_i32_1 = arith.constant 0 : i32
    return %arg0, %c0_i32, %c0_i32_0 : i32, i32, i32
  }
  func.func @transform_1(%arg0: i32) -> (i32, i32) {
    %c0_i32 = arith.constant 0 : i32
    %c0_i32_0 = arith.constant 0 : i32
    %c0_i32_1 = arith.constant 0 : i32
    return %c0_i32, %c0_i32_0 : i32, i32
  }
  func.func @transform_2(%arg0: i32) -> (i32, i32) {
    %c0_i32 = arith.constant 0 : i32
    %c0_i32_0 = arith.constant 0 : i32
    %c0_i32_1 = arith.constant 0 : i32
    return %c0_i32, %c0_i32_0 : i32, i32
  }
  func.func @transform_3(%arg0: i32) -> (i32, i32) {
    %c0_i32 = arith.constant 0 : i32
    %c0_i32_0 = arith.constant 0 : i32
    %c0_i32_1 = arith.constant 0 : i32
    return %c0_i32, %c0_i32_0 : i32, i32
  }
  func.func @transform_4(%arg0: i32) -> (i32, i32) {
    %c0_i32 = arith.constant 0 : i32
    %c0_i32_0 = arith.constant 0 : i32
    %c0_i32_1 = arith.constant 0 : i32
    return %c0_i32, %c0_i32_0 : i32, i32
  }
  func.func @transform_5(%arg0: i32) -> (i32, i32) {
    %c0_i32 = arith.constant 0 : i32
    %c0_i32_0 = arith.constant 0 : i32
    %c0_i32_1 = arith.constant 0 : i32
    return %c0_i32, %c0_i32_0 : i32, i32
  }
  func.func @transform_6(%arg0: i32) -> (i32, i32) {
    %c0_i32 = arith.constant 0 : i32
    %c0_i32_0 = arith.constant 0 : i32
    %c0_i32_1 = arith.constant 0 : i32
    return %c0_i32, %c0_i32_0 : i32, i32
  }
  func.func @transform_7(%arg0: i32) -> (i32, i32) {
    %c0_i32 = arith.constant 0 : i32
    %c0_i32_0 = arith.constant 0 : i32
    %c0_i32_1 = arith.constant 0 : i32
    return %c0_i32, %c0_i32_0 : i32, i32
  }
  func.func @transform_8(%arg0: i32) -> (i32, i32) {
    %c0_i32 = arith.constant 0 : i32
    %c0_i32_0 = arith.constant 0 : i32
    %c0_i32_1 = arith.constant 0 : i32
    return %c0_i32, %c0_i32_0 : i32, i32
  }
  func.func @transform_9(%arg0: i32) -> (i32, i32) {
    %c0_i32 = arith.constant 0 : i32
    %c0_i32_0 = arith.constant 0 : i32
    %c0_i32_1 = arith.constant 0 : i32
    return %c0_i32, %c0_i32_0 : i32, i32
  }
  func.func @transform_10(%arg0: i32) -> (i32, i32) {
    %c0_i32 = arith.constant 0 : i32
    %c0_i32_0 = arith.constant 0 : i32
    %c0_i32_1 = arith.constant 0 : i32
    return %c0_i32, %c0_i32_0 : i32, i32
  }
  func.func @transform_11(%arg0: i32) -> (i32, i32, i32) {
    %c0_i32 = arith.constant 0 : i32
    %c0_i32_0 = arith.constant 0 : i32
    %c0_i32_1 = arith.constant 0 : i32
    return %arg0, %c0_i32, %c0_i32_0 : i32, i32, i32
  }
}

</mosaic_0001>

<llo_original>
// kernel: cnnlayer_forward.1
$region0: #{cnnlayer_forward.1}
  #allocation0 [shape = 'u32[]', space=smem, size = 0x4, offset = 0x4, fixed_abs, tag = 'smem constant byte address 0x4 - core index']
  #allocation1 [shape = 'u32[72,128]{1,0:T(1,128)}', space=vmem, size = 0x9000, scoped, tag = 'internal scratch']
  #allocation2 [shape = 'f32[65,4]{1,0:T(8,128)}', space=vmem, size = 0x9000, scoped, tag = 'scratch operand']
  #allocation3 [shape = 'f32[33,8]{1,0:T(8,128)}', space=vmem, size = 0x5000, scoped, tag = 'scratch operand']
  #allocation4 [shape = 'f32[17,16]{1,0:T(8,128)}', space=vmem, size = 0x3000, scoped, tag = 'scratch operand']
  #allocation5 [shape = 'f32[9,32]{1,0:T(8,128)}', space=vmem, size = 0x2000, scoped, tag = 'scratch operand']
  #allocation6 [shape = 'f32[40,4]{1,0:T(8,128)}', space=vmem, size = 0x5000, scoped, tag = 'scratch operand']
  #allocation7 [shape = 'f32[24,8]{1,0:T(8,128)}', space=vmem, size = 0x3000, scoped, tag = 'scratch operand']
  #allocation8 [shape = 'f32[16,16]{1,0:T(8,128)}', space=vmem, size = 0x2000, scoped, tag = 'scratch operand']
  #allocation9 [shape = 'f32[12,32]{1,0:T(8,128)}', space=vmem, size = 0x2000, scoped, tag = 'scratch operand']
  %s0 = inlined_call_operand.vmem [shape: f32[2,65,8], index: 0, kind: input, shape index: {}]
  %s1 = inlined_call_operand.vmem [shape: f32[8,4], index: 1, kind: input, shape index: {}]
  %s2 = inlined_call_operand.vmem [shape: f32[32,8], index: 2, kind: input, shape index: {}]
  %s3 = inlined_call_operand.vmem [shape: f32[64,16], index: 3, kind: input, shape index: {}]
  %s4 = inlined_call_operand.vmem [shape: f32[128,32], index: 4, kind: input, shape index: {}]
  %s5 = inlined_call_operand.vmem [shape: f32[256,64], index: 5, kind: input, shape index: {}]
  %s6 = inlined_call_operand.vmem [shape: f32[1,4], index: 6, kind: input, shape index: {}]
  %s7 = inlined_call_operand.vmem [shape: f32[1,8], index: 7, kind: input, shape index: {}]
  %s8 = inlined_call_operand.vmem [shape: f32[1,16], index: 8, kind: input, shape index: {}]
  %s9 = inlined_call_operand.vmem [shape: f32[1,32], index: 9, kind: input, shape index: {}]
  %s10 = inlined_call_operand.vmem [shape: f32[1,64], index: 10, kind: input, shape index: {}]
  %s11 = inlined_call_operand.vmem [shape: f32[2,4,64], index: 11, kind: output, shape index: {}]
  %s12 = sld [smem:[#allocation0]]
  $region77: #{cnnlayer_forward.1} parent=0
    _
  %s14 = ssub.s32 1, %s12
  %s15 = scalar_select 0, %s14, %s12
  loop: start=0, step=1, limit=4
  $region2: #{cnnlayer_forward.1} parent=0 // loop_pre_header
    _
  $region3: #{cnnlayer_forward.1} parent=0 // loop_header
    %s17 = sphi 0, %s21
    %p18 = scmp.ge.s32.totalorder %s17, 4
    %s27 = sphi 0, %s29
    %s30 = sphi 0, %s27
    %s31 = sphi 0, %s30
    %s47 = sphi 0, %s31
    %s51 = sphi 0, %s51
    %s53 = sphi 0, %s51
    %s54 = sphi 0, %s53
    %s68 = sphi 0, %s54
    %s72 = sphi 0, %s72
    %s74 = sphi 0, %s72
    %s75 = sphi 0, %s74
    %s89 = sphi 0, %s75
    %s93 = sphi 0, %s93
    %s95 = sphi 0, %s93
    %s96 = sphi 0, %s95
    %s110 = sphi 0, %s96
    %s114 = sphi 0, %s114
    %s116 = sphi 0, %s114
    %s117 = sphi 0, %s116
    %s131 = sphi 0, %s117
    %s135 = sphi 0, %s135
    %s137 = sphi 0, %s135
    %s138 = sphi 0, %s137
    %s152 = sphi 0, %s138
    %s156 = sphi 0, %s156
    %s158 = sphi 0, %s156
    %s159 = sphi 0, %s158
    %s173 = sphi 0, %s159
    %s177 = sphi 0, %s177
    %s179 = sphi 0, %s177
    %s180 = sphi 0, %s179
    %s194 = sphi 0, %s180
    %s198 = sphi 0, %s198
    %s200 = sphi 0, %s198
    %s201 = sphi 0, %s200
    %s215 = sphi 0, %s201
    %s219 = sphi 0, %s219
    %s221 = sphi 0, %s219
    %s222 = sphi 0, %s221
    %s236 = sphi 0, %s222
    %s240 = sphi 0, %s240
    %s242 = sphi 0, %s240
    %s243 = sphi 0, %s242
    %s257 = sphi 0, %s243
    %s263 = sphi 0, %s265
    %s266 = sphi 0, %s263
    %s267 = sphi 0, %s266
    %s283 = sphi 0, %s267
  $region4: #{cnnlayer_forward.1} parent=0 // loop_header_branch
    %20 = sbr.rel (%p18) target = $region8
  $region5: #{cnnlayer_forward.1} parent=0 // loop_body
    %s22 = ssub.s32 %s17, 1
    %s23 = ssub.s32 %s17, 2
    %s24 = sadd.s32 %s17, 1
    %s25 = ssub.s32 %s17, %s24
    %p26 = scmp.eq.s32.totalorder %s25, 0
    %s28 = sadd.s32 %s27, 1
    %s29 = scalar_select %p26, %s27, %s28
    %p32 = pneg %p26
    %p33 = scmp.eq.s32.totalorder %s17, 1
    %p34 = por %p32, %p33
    %p35 = scmp.ne.s32.totalorder %s27, %s30
    %p36 = scmp.eq.s32.totalorder %s17, 0
    %p37 = por %p35, %p36
    %p38 = scmp.ne.s32.totalorder %s27, %s30
    %p39 = scmp.eq.s32.totalorder %s22, 1
    %p40 = por %p38, %p39
    %p41 = scmp.ne.s32.totalorder %s30, %s31
    %p42 = scmp.eq.s32.totalorder %s22, 0
    %p43 = por %p41, %p42
    %p44 = scmp.ne.s32.totalorder %s30, %s31
    %p45 = scmp.eq.s32.totalorder %s23, 1
    %p46 = por %p44, %p45
    %p48 = scmp.ne.s32.totalorder %s31, %s47
    %p49 = scmp.eq.s32.totalorder %s23, 0
    %p50 = por %p48, %p49
    %s52 = sadd.s32 %s51, 1
    %p55 = scmp.eq.s32.totalorder %s17, 1
    %p56 = scmp.ne.s32.totalorder %s51, %s53
    %p57 = scmp.eq.s32.totalorder %s17, 0
    %p58 = por %p56, %p57
    %p59 = scmp.ne.s32.totalorder %s51, %s53
    %p60 = scmp.eq.s32.totalorder %s22, 1
    %p61 = por %p59, %p60
    %p62 = scmp.ne.s32.totalorder %s53, %s54
    %p63 = scmp.eq.s32.totalorder %s22, 0
    %p64 = por %p62, %p63
    %p65 = scmp.ne.s32.totalorder %s53, %s54
    %p66 = scmp.eq.s32.totalorder %s23, 1
    %p67 = por %p65, %p66
    %p69 = scmp.ne.s32.totalorder %s54, %s68
    %p70 = scmp.eq.s32.totalorder %s23, 0
    %p71 = por %p69, %p70
    %s73 = sadd.s32 %s72, 1
    %p76 = scmp.eq.s32.totalorder %s17, 1
    %p77 = scmp.ne.s32.totalorder %s72, %s74
    %p78 = scmp.eq.s32.totalorder %s17, 0
    %p79 = por %p77, %p78
    %p80 = scmp.ne.s32.totalorder %s72, %s74
    %p81 = scmp.eq.s32.totalorder %s22, 1
    %p82 = por %p80, %p81
    %p83 = scmp.ne.s32.totalorder %s74, %s75
    %p84 = scmp.eq.s32.totalorder %s22, 0
    %p85 = por %p83, %p84
    %p86 = scmp.ne.s32.totalorder %s74, %s75
    %p87 = scmp.eq.s32.totalorder %s23, 1
    %p88 = por %p86, %p87
    %p90 = scmp.ne.s32.totalorder %s75, %s89
    %p91 = scmp.eq.s32.totalorder %s23, 0
    %p92 = por %p90, %p91
    %s94 = sadd.s32 %s93, 1
    %p97 = scmp.eq.s32.totalorder %s17, 1
    %p98 = scmp.ne.s32.totalorder %s93, %s95
    %p99 = scmp.eq.s32.totalorder %s17, 0
    %p100 = por %p98, %p99
    %p101 = scmp.ne.s32.totalorder %s93, %s95
    %p102 = scmp.eq.s32.totalorder %s22, 1
    %p103 = por %p101, %p102
    %p104 = scmp.ne.s32.totalorder %s95, %s96
    %p105 = scmp.eq.s32.totalorder %s22, 0
    %p106 = por %p104, %p105
    %p107 = scmp.ne.s32.totalorder %s95, %s96
    %p108 = scmp.eq.s32.totalorder %s23, 1
    %p109 = por %p107, %p108
    %p111 = scmp.ne.s32.totalorder %s96, %s110
    %p112 = scmp.eq.s32.totalorder %s23, 0
    %p113 = por %p111, %p112
    %s115 = sadd.s32 %s114, 1
    %p118 = scmp.eq.s32.totalorder %s17, 1
    %p119 = scmp.ne.s32.totalorder %s114, %s116
    %p120 = scmp.eq.s32.totalorder %s17, 0
    %p121 = por %p119, %p120
    %p122 = scmp.ne.s32.totalorder %s114, %s116
    %p123 = scmp.eq.s32.totalorder %s22, 1
    %p124 = por %p122, %p123
    %p125 = scmp.ne.s32.totalorder %s116, %s117
    %p126 = scmp.eq.s32.totalorder %s22, 0
    %p127 = por %p125, %p126
    %p128 = scmp.ne.s32.totalorder %s116, %s117
    %p129 = scmp.eq.s32.totalorder %s23, 1
    %p130 = por %p128, %p129
    %p132 = scmp.ne.s32.totalorder %s117, %s131
    %p133 = scmp.eq.s32.totalorder %s23, 0
    %p134 = por %p132, %p133
    %s136 = sadd.s32 %s135, 1
    %p139 = scmp.eq.s32.totalorder %s17, 1
    %p140 = scmp.ne.s32.totalorder %s135, %s137
    %p141 = scmp.eq.s32.totalorder %s17, 0
    %p142 = por %p140, %p141
    %p143 = scmp.ne.s32.totalorder %s135, %s137
    %p144 = scmp.eq.s32.totalorder %s22, 1
    %p145 = por %p143, %p144
    %p146 = scmp.ne.s32.totalorder %s137, %s138
    %p147 = scmp.eq.s32.totalorder %s22, 0
    %p148 = por %p146, %p147
    %p149 = scmp.ne.s32.totalorder %s137, %s138
    %p150 = scmp.eq.s32.totalorder %s23, 1
    %p151 = por %p149, %p150
    %p153 = scmp.ne.s32.totalorder %s138, %s152
    %p154 = scmp.eq.s32.totalorder %s23, 0
    %p155 = por %p153, %p154
    %s157 = sadd.s32 %s156, 1
    %p160 = scmp.eq.s32.totalorder %s17, 1
    %p161 = scmp.ne.s32.totalorder %s156, %s158
    %p162 = scmp.eq.s32.totalorder %s17, 0
    %p163 = por %p161, %p162
    %p164 = scmp.ne.s32.totalorder %s156, %s158
    %p165 = scmp.eq.s32.totalorder %s22, 1
    %p166 = por %p164, %p165
    %p167 = scmp.ne.s32.totalorder %s158, %s159
    %p168 = scmp.eq.s32.totalorder %s22, 0
    %p169 = por %p167, %p168
    %p170 = scmp.ne.s32.totalorder %s158, %s159
    %p171 = scmp.eq.s32.totalorder %s23, 1
    %p172 = por %p170, %p171
    %p174 = scmp.ne.s32.totalorder %s159, %s173
    %p175 = scmp.eq.s32.totalorder %s23, 0
    %p176 = por %p174, %p175
    %s178 = sadd.s32 %s177, 1
    %p181 = scmp.eq.s32.totalorder %s17, 1
    %p182 = scmp.ne.s32.totalorder %s177, %s179
    %p183 = scmp.eq.s32.totalorder %s17, 0
    %p184 = por %p182, %p183
    %p185 = scmp.ne.s32.totalorder %s177, %s179
    %p186 = scmp.eq.s32.totalorder %s22, 1
    %p187 = por %p185, %p186
    %p188 = scmp.ne.s32.totalorder %s179, %s180
    %p189 = scmp.eq.s32.totalorder %s22, 0
    %p190 = por %p188, %p189
    %p191 = scmp.ne.s32.totalorder %s179, %s180
    %p192 = scmp.eq.s32.totalorder %s23, 1
    %p193 = por %p191, %p192
    %p195 = scmp.ne.s32.totalorder %s180, %s194
    %p196 = scmp.eq.s32.totalorder %s23, 0
    %p197 = por %p195, %p196
    %s199 = sadd.s32 %s198, 1
    %p202 = scmp.eq.s32.totalorder %s17, 1
    %p203 = scmp.ne.s32.totalorder %s198, %s200
    %p204 = scmp.eq.s32.totalorder %s17, 0
    %p205 = por %p203, %p204
    %p206 = scmp.ne.s32.totalorder %s198, %s200
    %p207 = scmp.eq.s32.totalorder %s22, 1
    %p208 = por %p206, %p207
    %p209 = scmp.ne.s32.totalorder %s200, %s201
    %p210 = scmp.eq.s32.totalorder %s22, 0
    %p211 = por %p209, %p210
    %p212 = scmp.ne.s32.totalorder %s200, %s201
    %p213 = scmp.eq.s32.totalorder %s23, 1
    %p214 = por %p212, %p213
    %p216 = scmp.ne.s32.totalorder %s201, %s215
    %p217 = scmp.eq.s32.totalorder %s23, 0
    %p218 = por %p216, %p217
    %s220 = sadd.s32 %s219, 1
    %p223 = scmp.eq.s32.totalorder %s17, 1
    %p224 = scmp.ne.s32.totalorder %s219, %s221
    %p225 = scmp.eq.s32.totalorder %s17, 0
    %p226 = por %p224, %p225
    %p227 = scmp.ne.s32.totalorder %s219, %s221
    %p228 = scmp.eq.s32.totalorder %s22, 1
    %p229 = por %p227, %p228
    %p230 = scmp.ne.s32.totalorder %s221, %s222
    %p231 = scmp.eq.s32.totalorder %s22, 0
    %p232 = por %p230, %p231
    %p233 = scmp.ne.s32.totalorder %s221, %s222
    %p234 = scmp.eq.s32.totalorder %s23, 1
    %p235 = por %p233, %p234
    %p237 = scmp.ne.s32.totalorder %s222, %s236
    %p238 = scmp.eq.s32.totalorder %s23, 0
    %p239 = por %p237, %p238
    %s241 = sadd.s32 %s240, 1
    %p244 = scmp.eq.s32.totalorder %s17, 1
    %p245 = scmp.ne.s32.totalorder %s240, %s242
    %p246 = scmp.eq.s32.totalorder %s17, 0
    %p247 = por %p245, %p246
    %p248 = scmp.ne.s32.totalorder %s240, %s242
    %p249 = scmp.eq.s32.totalorder %s22, 1
    %p250 = por %p248, %p249
    %p251 = scmp.ne.s32.totalorder %s242, %s243
    %p252 = scmp.eq.s32.totalorder %s22, 0
    %p253 = por %p251, %p252
    %p254 = scmp.ne.s32.totalorder %s242, %s243
    %p255 = scmp.eq.s32.totalorder %s23, 1
    %p256 = por %p254, %p255
    %p258 = scmp.ne.s32.totalorder %s243, %s257
    %p259 = scmp.eq.s32.totalorder %s23, 0
    %p260 = por %p258, %p259
    %s261 = ssub.s32 %s17, %s24
    %p262 = scmp.eq.s32.totalorder %s261, 0
    %s264 = sadd.s32 %s263, 1
    %s265 = scalar_select %p262, %s263, %s264
    %p268 = pneg %p262
    %p269 = scmp.eq.s32.totalorder %s17, 1
    %p270 = por %p268, %p269
    %p271 = scmp.ne.s32.totalorder %s263, %s266
    %p272 = scmp.eq.s32.totalorder %s17, 0
    %p273 = por %p271, %p272
    %p274 = scmp.ne.s32.totalorder %s263, %s266
    %p275 = scmp.eq.s32.totalorder %s22, 1
    %p276 = por %p274, %p275
    %p277 = scmp.ne.s32.totalorder %s266, %s267
    %p278 = scmp.eq.s32.totalorder %s22, 0
    %p279 = por %p277, %p278
    %p280 = scmp.ne.s32.totalorder %s266, %s267
    %p281 = scmp.eq.s32.totalorder %s23, 1
    %p282 = por %p280, %p281
    %p284 = scmp.ne.s32.totalorder %s267, %s283
    %p285 = scmp.eq.s32.totalorder %s23, 0
    %p286 = por %p284, %p285
    %p287 = scmp.le.s32.totalorder 1, %s17
    %p288 = scmp.lt.s32.totalorder %s17, 3
    %p289 = pnand %p287, %p288
    %p290 = pneg %p289
    // Predicated region
    $region9: #{cnnlayer_forward.1} parent=5 // pred_check
      _
    $region10: #{cnnlayer_forward.1} parent=5 // pred_check_branch
      %292 = sbr.rel (%p289) target = $region12
    $region11: #{cnnlayer_forward.1} parent=5 // pred_region
      %s293 = ssub.s32 %s17, 1
      // Predicated region
      $region13: #{cnnlayer_forward.1} parent=11 // pred_check
        %p294 = pneg %p64
      $region14: #{cnnlayer_forward.1} parent=11 // pred_check_branch
        %296 = sbr.rel (%p294) target = $region16
      $region15: #{cnnlayer_forward.1} parent=11 // pred_region
        _
      $region16: #{cnnlayer_forward.1} parent=11 // pred_fallthru
        _
      // Predicated region
      $region17: #{cnnlayer_forward.1} parent=11 // pred_check
        %p297 = pneg %p85
      $region18: #{cnnlayer_forward.1} parent=11 // pred_check_branch
        %299 = sbr.rel (%p297) target = $region20
      $region19: #{cnnlayer_forward.1} parent=11 // pred_region
        _
      $region20: #{cnnlayer_forward.1} parent=11 // pred_fallthru
        _
      // Predicated region
      $region21: #{cnnlayer_forward.1} parent=11 // pred_check
        %p300 = pneg %p106
      $region22: #{cnnlayer_forward.1} parent=11 // pred_check_branch
        %302 = sbr.rel (%p300) target = $region24
      $region23: #{cnnlayer_forward.1} parent=11 // pred_region
        _
      $region24: #{cnnlayer_forward.1} parent=11 // pred_fallthru
        _
      // Predicated region
      $region25: #{cnnlayer_forward.1} parent=11 // pred_check
        %p303 = pneg %p127
      $region26: #{cnnlayer_forward.1} parent=11 // pred_check_branch
        %305 = sbr.rel (%p303) target = $region28
      $region27: #{cnnlayer_forward.1} parent=11 // pred_region
        _
      $region28: #{cnnlayer_forward.1} parent=11 // pred_fallthru
        _
      // Predicated region
      $region29: #{cnnlayer_forward.1} parent=11 // pred_check
        %p306 = pneg %p148
      $region30: #{cnnlayer_forward.1} parent=11 // pred_check_branch
        %308 = sbr.rel (%p306) target = $region32
      $region31: #{cnnlayer_forward.1} parent=11 // pred_region
        _
      $region32: #{cnnlayer_forward.1} parent=11 // pred_fallthru
        _
      // Predicated region
      $region33: #{cnnlayer_forward.1} parent=11 // pred_check
        %p309 = pneg %p169
      $region34: #{cnnlayer_forward.1} parent=11 // pred_check_branch
        %311 = sbr.rel (%p309) target = $region36
      $region35: #{cnnlayer_forward.1} parent=11 // pred_region
        _
      $region36: #{cnnlayer_forward.1} parent=11 // pred_fallthru
        _
      // Predicated region
      $region37: #{cnnlayer_forward.1} parent=11 // pred_check
        %p312 = pneg %p190
      $region38: #{cnnlayer_forward.1} parent=11 // pred_check_branch
        %314 = sbr.rel (%p312) target = $region40
      $region39: #{cnnlayer_forward.1} parent=11 // pred_region
        _
      $region40: #{cnnlayer_forward.1} parent=11 // pred_fallthru
        _
      // Predicated region
      $region41: #{cnnlayer_forward.1} parent=11 // pred_check
        %p315 = pneg %p211
      $region42: #{cnnlayer_forward.1} parent=11 // pred_check_branch
        %317 = sbr.rel (%p315) target = $region44
      $region43: #{cnnlayer_forward.1} parent=11 // pred_region
        _
      $region44: #{cnnlayer_forward.1} parent=11 // pred_fallthru
        _
      // Predicated region
      $region45: #{cnnlayer_forward.1} parent=11 // pred_check
        %p318 = pneg %p232
      $region46: #{cnnlayer_forward.1} parent=11 // pred_check_branch
        %320 = sbr.rel (%p318) target = $region48
      $region47: #{cnnlayer_forward.1} parent=11 // pred_region
        _
      $region48: #{cnnlayer_forward.1} parent=11 // pred_fallthru
        _
      // Predicated region
      $region49: #{cnnlayer_forward.1} parent=11 // pred_check
        %p321 = pneg %p253
      $region50: #{cnnlayer_forward.1} parent=11 // pred_check_branch
        %323 = sbr.rel (%p321) target = $region52
      $region51: #{cnnlayer_forward.1} parent=11 // pred_region
        _
      $region52: #{cnnlayer_forward.1} parent=11 // pred_fallthru
        _
    $region12: #{cnnlayer_forward.1} parent=5 // pred_fallthru
      _
    %p324 = scmp.lt.s32.totalorder %s17, 2
    // Predicated region
    $region53: #{cnnlayer_forward.1} parent=5 // pred_check
      %p325 = pneg %p324
    $region54: #{cnnlayer_forward.1} parent=5 // pred_check_branch
      %327 = sbr.rel (%p325) target = $region56
    $region55: #{cnnlayer_forward.1} parent=5 // pred_region
      // Predicated region
      $region57: #{cnnlayer_forward.1} parent=55 // pred_check
        %p328 = pneg %p37
      $region58: #{cnnlayer_forward.1} parent=55 // pred_check_branch
        %330 = sbr.rel (%p328) target = $region60
      $region59: #{cnnlayer_forward.1} parent=55 // pred_region
        %p331 = scmp.lt.s32.totalorder %s17, 1
        %s332 = scalar_select %p331, %s17, 1
        %s333 = smul.addr %s332, 9
        %s334 = smul.addr %s333, 8
        %s335 = scalar_lea.vmem %s0, %s334
      $region60: #{cnnlayer_forward.1} parent=55 // pred_fallthru
        _
    $region56: #{cnnlayer_forward.1} parent=5 // pred_fallthru
      _
    %p336 = scmp.le.s32.totalorder 1, %s17
    %p337 = scmp.lt.s32.totalorder %s17, 3
    %p338 = pnand %p336, %p337
    %p339 = pneg %p338
    // Predicated region
    $region61: #{cnnlayer_forward.1} parent=5 // pred_check
      _
    $region62: #{cnnlayer_forward.1} parent=5 // pred_check_branch
      %341 = sbr.rel (%p338) target = $region64
    $region63: #{cnnlayer_forward.1} parent=5 // pred_region
      %s342 = ssub.s32 %s17, 1
      %p343 = scmp.lt.s32.totalorder %s22, 1
      %s344 = scalar_select %p343, %s22, 1
      %s345 = smul.addr %s344, 9
      %s346 = smul.addr %s345, 8
      %s347 = scalar_lea.vmem %s0, %s346
      %p348 = pneg %p43
      %p349 = pneg %p40
      %p350 = pneg %p64
      %p351 = pneg %p61
      %p352 = pneg %p85
      %p353 = pneg %p82
      %p354 = pneg %p106
      %p355 = pneg %p103
      %p356 = pneg %p127
      %p357 = pneg %p124
      %p358 = pneg %p148
      %p359 = pneg %p145
      %p360 = pneg %p169
      %p361 = pneg %p166
      %p362 = pneg %p190
      %p363 = pneg %p187
      %p364 = pneg %p211
      %p365 = pneg %p208
      %p366 = pneg %p232
      %p367 = pneg %p229
      %p368 = pneg %p253
      %p369 = pneg %p250
      %p370 = pneg %p279
      %p371 = pneg %p276
      %p372 = scmp.lt.s32.totalorder %s22, 1
      %s373 = scalar_select %p372, %s22, 1
      %s374 = smul.addr %s373, 4
      %s375 = scalar_lea.vmem %s11, %s374
      %p376 = scmp.lt.s32.totalorder %s22, 1
      %s377 = scalar_select %p376, %s22, 1
      %s378 = smul.addr %s377, 9
      %s379 = smul.addr %s378, 8
      %s380 = scalar_lea.vmem %s0, %s379
      %p381 = scmp.lt.s32.totalorder %s22, 1
      %s382 = scalar_select %p381, %s22, 1
      %s383 = smul.addr %s382, 4
      %s384 = scalar_lea.vmem %s11, %s383
      %v385 = vld [vmem:[%s380] sm:$0xff]
      %v386 = vld [vmem:[%s380 + $0x8] sm:$0xff]
      %v387 = vld [vmem:[%s380 + $0x10] sm:$0xff]
      %v388 = vld [vmem:[%s380 + $0x18] sm:$0xff]
      %v389 = vld [vmem:[%s380 + $0x20] sm:$0xff]
      %v390 = vld [vmem:[%s380 + $0x28] sm:$0xff]
      %v391 = vld [vmem:[%s380 + $0x30] sm:$0xff]
      %v392 = vld [vmem:[%s380 + $0x38] sm:$0xff]
      %v393 = vld [vmem:[%s380 + $0x40] sm:$0x1]
      %v394 = vld [vmem:[%s1] sm:$0xff]
      %v395 = vld [vmem:[%s6] sm:$0x1]
      %v397 = vperm.slane %v395, 0
      %vm399 = vcmask 64512
      %v401 = vsel %vm399, %v385, 0
      %v404 = vsel %vm399, %v386, 0
      %v407 = vsel %vm399, %v387, 0
      %v410 = vsel %vm399, %v388, 0
      %v413 = vsel %vm399, %v389, 0
      %v416 = vsel %vm399, %v390, 0
      %v419 = vsel %vm399, %v391, 0
      %v422 = vsel %vm399, %v392, 0
      %v425 = vsel %vm399, %v393, 0
      %427 = vmatpush.msra.mxu0 0.0
      %428 = vmatpush.msra.mxu0 0.0
      %429 = vmatpush.msra.mxu0 0.0
      %430 = vmatpush.msra.mxu0 0.0
      %431 = vmatpush.msra.mxu0 0.0
      %432 = vmatpush.msra.mxu0 0.0
      %433 = vmatpush.msra.mxu0 0.0
      %434 = vmatpush.msra.mxu0 0.0
      %435 = vmatpush.msra.mxu0 0.0
      %436 = vmatpush.msra.mxu0 0.0
      %437 = vmatpush.msra.mxu0 0.0
      %438 = vmatpush.msra.mxu0 0.0
      %439 = vmatpush.msra.mxu0 0.0
      %440 = vmatpush.msra.mxu0 0.0
      %441 = vmatpush.msra.mxu0 0.0
      %442 = vmatpush.msra.mxu0 %v394
      %443 = vmatmul.f32.gmra.mxu0 %v401
      %v444 = vpop.f32.mrf.mxu0
      %v445 = vadd.f32 %v397, %v444
      %446 = vmatmul.f32.gmra.mxu0 %v404
      %v447 = vpop.f32.mrf.mxu0
      %v448 = vadd.f32 %v397, %v447
      %449 = vmatmul.f32.gmra.mxu0 %v407
      %v450 = vpop.f32.mrf.mxu0
      %v451 = vadd.f32 %v397, %v450
      %452 = vmatmul.f32.gmra.mxu0 %v410
      %v453 = vpop.f32.mrf.mxu0
      %v454 = vadd.f32 %v397, %v453
      %455 = vmatmul.f32.gmra.mxu0 %v413
      %v456 = vpop.f32.mrf.mxu0
      %v457 = vadd.f32 %v397, %v456
      %458 = vmatmul.f32.gmra.mxu0 %v416
      %v459 = vpop.f32.mrf.mxu0
      %v460 = vadd.f32 %v397, %v459
      %461 = vmatmul.f32.gmra.mxu0 %v419
      %v462 = vpop.f32.mrf.mxu0
      %v463 = vadd.f32 %v397, %v462
      %464 = vmatmul.f32.gmra.mxu0 %v422
      %v465 = vpop.f32.mrf.mxu0
      %v466 = vadd.f32 %v397, %v465
      %467 = vmatmul.f32.gmra.mxu0 %v425
      %v468 = vpop.f32.mrf.mxu0
      %v469 = vadd.f32 %v397, %v468
      %470 = vdwg.mxu0
      %v471 = vmax.f32 %v445, 0.0
      %v472 = vmax.f32 %v448, 0.0
      %v473 = vmax.f32 %v451, 0.0
      %v474 = vmax.f32 %v454, 0.0
      %v475 = vmax.f32 %v457, 0.0
      %v476 = vmax.f32 %v460, 0.0
      %v477 = vmax.f32 %v463, 0.0
      %v478 = vmax.f32 %v466, 0.0
      %v479 = vmax.f32 %v469, 0.0
      %vm480 = vcmask 31744
      %481 = vst.msk [vmem:[#allocation2] sm:$0xff] %vm480, %v471
      %482 = vst.msk [vmem:[#allocation2 + $0x8] sm:$0xff] %vm480, %v472
      %483 = vst.msk [vmem:[#allocation2 + $0x10] sm:$0xff] %vm480, %v473
      %484 = vst.msk [vmem:[#allocation2 + $0x18] sm:$0xff] %vm480, %v474
      %485 = vst.msk [vmem:[#allocation2 + $0x20] sm:$0xff] %vm480, %v475
      %486 = vst.msk [vmem:[#allocation2 + $0x28] sm:$0xff] %vm480, %v476
      %487 = vst.msk [vmem:[#allocation2 + $0x30] sm:$0xff] %vm480, %v477
      %488 = vst.msk [vmem:[#allocation2 + $0x38] sm:$0xff] %vm480, %v478
      %vm489 = vcmask 24576
      %490 = vst.msk [vmem:[#allocation2 + $0x40] sm:$0x1] %vm489, %v479
      %v491 = vld [vmem:[#allocation2] ss:$2 sm:$0xff]
      %s492 = scalar_lea.vmem [#allocation2], 16
      %v493 = vld [vmem:[%s492] ss:$2 sm:$0xff]
      %s494 = scalar_lea.vmem [#allocation2], 32
      %v495 = vld [vmem:[%s494] ss:$2 sm:$0xff]
      %s496 = scalar_lea.vmem [#allocation2], 48
      %v497 = vld [vmem:[%s496] ss:$2 sm:$0xff]
      %s498 = scalar_lea.vmem [#allocation2], 1
      %v499 = vld [vmem:[%s498] ss:$2 sm:$0xff]
      %s500 = scalar_lea.vmem [#allocation2], 17
      %v501 = vld [vmem:[%s500] ss:$2 sm:$0xff]
      %s502 = scalar_lea.vmem [#allocation2], 33
      %v503 = vld [vmem:[%s502] ss:$2 sm:$0xff]
      %s504 = scalar_lea.vmem [#allocation2], 49
      %v505 = vld [vmem:[%s504] ss:$2 sm:$0xff]
      %v506 = vmax.f32 %v491, %v499
      %v507 = vmax.f32 %v493, %v501
      %v508 = vmax.f32 %v495, %v503
      %v509 = vmax.f32 %v497, %v505
      %510 = vst.msk [vmem:[#allocation6] sm:$0xff] %vm480, 0.0
      %511 = vst.msk [vmem:[#allocation6 + $0x8] sm:$0xff] %vm480, 0.0
      %512 = vst.msk [vmem:[#allocation6 + $0x10] sm:$0xff] %vm480, 0.0
      %513 = vst.msk [vmem:[#allocation6 + $0x18] sm:$0xff] %vm480, 0.0
      %514 = vst.msk [vmem:[#allocation6 + $0x20] sm:$0xff] %vm480, 0.0
      %515 = vst.msk [vmem:[#allocation6 + $0x4] sm:$0xff] %vm480, %v506
      %516 = vst.msk [vmem:[#allocation6 + $0xc] sm:$0xff] %vm480, %v507
      %517 = vst.msk [vmem:[#allocation6 + $0x14] sm:$0xff] %vm480, %v508
      %518 = vst.msk [vmem:[#allocation6 + $0x1c] sm:$0xff] %vm480, %v509
      %v519 = vld [vmem:[#allocation6] sm:$0xff]
      %v520 = vld [vmem:[#allocation6 + $0x8] sm:$0xff]
      %v521 = vld [vmem:[#allocation6 + $0x10] sm:$0xff]
      %v522 = vld [vmem:[#allocation6 + $0x18] sm:$0xff]
      %v523 = vld [vmem:[#allocation6 + $0x20] sm:$0xff]
      %vm529 = vcmask 1046528
      %v530 = vrot.slane %v519, 1
      %v531 = vrot.slane %v520, 1
      %v532 = vsel %vm529, %v530, %v531
      %v533 = vrot.slane %v521, 1
      %v534 = vsel %vm529, %v531, %v533
      %v535 = vrot.slane %v522, 1
      %v536 = vsel %vm529, %v533, %v535
      %v537 = vrot.slane %v523, 1
      %v538 = vsel %vm529, %v535, %v537
      %539 = vrot.lane.b32.xlu0 %v532, 4
      %v540 = vpop.permute.xlu0 %539
      %541 = vrot.lane.b32.xlu0 %v534, 4
      %v542 = vpop.permute.xlu0 %541
      %543 = vrot.lane.b32.xlu0 %v536, 4
      %v544 = vpop.permute.xlu0 %543
      %545 = vrot.lane.b32.xlu0 %v538, 4
      %v546 = vpop.permute.xlu0 %545
      %547 = vrot.lane.b32.xlu0 %v537, 4
      %v548 = vpop.permute.xlu0 %547
      %vm554 = vcmask 1045504
      %v555 = vrot.slane %v519, 2
      %v556 = vrot.slane %v520, 2
      %v557 = vsel %vm554, %v555, %v556
      %v558 = vrot.slane %v521, 2
      %v559 = vsel %vm554, %v556, %v558
      %v560 = vrot.slane %v522, 2
      %v561 = vsel %vm554, %v558, %v560
      %v562 = vrot.slane %v523, 2
      %v563 = vsel %vm554, %v560, %v562
      %564 = vrot.lane.b32.xlu0 %v557, 8
      %v565 = vpop.permute.xlu0 %564
      %566 = vrot.lane.b32.xlu0 %v559, 8
      %v567 = vpop.permute.xlu0 %566
      %568 = vrot.lane.b32.xlu0 %v561, 8
      %v569 = vpop.permute.xlu0 %568
      %570 = vrot.lane.b32.xlu0 %v563, 8
      %v571 = vpop.permute.xlu0 %570
      %572 = vrot.lane.b32.xlu0 %v562, 8
      %v573 = vpop.permute.xlu0 %572
      %vm579 = vcmask 1044480
      %v580 = vrot.slane %v519, 3
      %v581 = vrot.slane %v520, 3
      %v582 = vsel %vm579, %v580, %v581
      %v583 = vrot.slane %v521, 3
      %v584 = vsel %vm579, %v581, %v583
      %v585 = vrot.slane %v522, 3
      %v586 = vsel %vm579, %v583, %v585
      %v587 = vrot.slane %v523, 3
      %v588 = vsel %vm579, %v585, %v587
      %589 = vrot.lane.b32.xlu0 %v582, 12
      %v590 = vpop.permute.xlu0 %589
      %591 = vrot.lane.b32.xlu0 %v584, 12
      %v592 = vpop.permute.xlu0 %591
      %593 = vrot.lane.b32.xlu0 %v586, 12
      %v594 = vpop.permute.xlu0 %593
      %595 = vrot.lane.b32.xlu0 %v588, 12
      %v596 = vpop.permute.xlu0 %595
      %597 = vrot.lane.b32.xlu0 %v587, 12
      %v598 = vpop.permute.xlu0 %597
      %vm604 = vcmask 1043456
      %v605 = vrot.slane %v519, 4
      %v606 = vrot.slane %v520, 4
      %v607 = vsel %vm604, %v605, %v606
      %v608 = vrot.slane %v521, 4
      %v609 = vsel %vm604, %v606, %v608
      %v610 = vrot.slane %v522, 4
      %v611 = vsel %vm604, %v608, %v610
      %v612 = vrot.slane %v523, 4
      %v613 = vsel %vm604, %v610, %v612
      %614 = vrot.lane.b32.xlu0 %v607, 16
      %v615 = vpop.permute.xlu0 %614
      %616 = vrot.lane.b32.xlu0 %v609, 16
      %v617 = vpop.permute.xlu0 %616
      %618 = vrot.lane.b32.xlu0 %v611, 16
      %v619 = vpop.permute.xlu0 %618
      %620 = vrot.lane.b32.xlu0 %v613, 16
      %v621 = vpop.permute.xlu0 %620
      %622 = vrot.lane.b32.xlu0 %v612, 16
      %v623 = vpop.permute.xlu0 %622
      %vm629 = vcmask 1042432
      %v630 = vrot.slane %v519, 5
      %v631 = vrot.slane %v520, 5
      %v632 = vsel %vm629, %v630, %v631
      %v633 = vrot.slane %v521, 5
      %v634 = vsel %vm629, %v631, %v633
      %v635 = vrot.slane %v522, 5
      %v636 = vsel %vm629, %v633, %v635
      %v637 = vrot.slane %v523, 5
      %v638 = vsel %vm629, %v635, %v637
      %639 = vrot.lane.b32.xlu0 %v632, 20
      %v640 = vpop.permute.xlu0 %639
      %641 = vrot.lane.b32.xlu0 %v634, 20
      %v642 = vpop.permute.xlu0 %641
      %643 = vrot.lane.b32.xlu0 %v636, 20
      %v644 = vpop.permute.xlu0 %643
      %645 = vrot.lane.b32.xlu0 %v638, 20
      %v646 = vpop.permute.xlu0 %645
      %647 = vrot.lane.b32.xlu0 %v637, 20
      %v648 = vpop.permute.xlu0 %647
      %vm654 = vcmask 1041408
      %v655 = vrot.slane %v519, 6
      %v656 = vrot.slane %v520, 6
      %v657 = vsel %vm654, %v655, %v656
      %v658 = vrot.slane %v521, 6
      %v659 = vsel %vm654, %v656, %v658
      %v660 = vrot.slane %v522, 6
      %v661 = vsel %vm654, %v658, %v660
      %v662 = vrot.slane %v523, 6
      %v663 = vsel %vm654, %v660, %v662
      %664 = vrot.lane.b32.xlu0 %v657, 24
      %v665 = vpop.permute.xlu0 %664
      %666 = vrot.lane.b32.xlu0 %v659, 24
      %v667 = vpop.permute.xlu0 %666
      %668 = vrot.lane.b32.xlu0 %v661, 24
      %v669 = vpop.permute.xlu0 %668
      %670 = vrot.lane.b32.xlu0 %v663, 24
      %v671 = vpop.permute.xlu0 %670
      %672 = vrot.lane.b32.xlu0 %v662, 24
      %v673 = vpop.permute.xlu0 %672
      %vm679 = vcmask 1040384
      %v680 = vrot.slane %v519, 7
      %v681 = vrot.slane %v520, 7
      %v682 = vsel %vm679, %v680, %v681
      %v683 = vrot.slane %v521, 7
      %v684 = vsel %vm679, %v681, %v683
      %v685 = vrot.slane %v522, 7
      %v686 = vsel %vm679, %v683, %v685
      %v687 = vrot.slane %v523, 7
      %v688 = vsel %vm679, %v685, %v687
      %689 = vrot.lane.b32.xlu0 %v682, 28
      %v690 = vpop.permute.xlu0 %689
      %691 = vrot.lane.b32.xlu0 %v684, 28
      %v692 = vpop.permute.xlu0 %691
      %693 = vrot.lane.b32.xlu0 %v686, 28
      %v694 = vpop.permute.xlu0 %693
      %695 = vrot.lane.b32.xlu0 %v688, 28
      %v696 = vpop.permute.xlu0 %695
      %697 = vrot.lane.b32.xlu0 %v687, 28
      %v698 = vpop.permute.xlu0 %697
      %v704 = vsel %vm480, %v519, %v540
      %v705 = vsel %vm480, %v520, %v542
      %v706 = vsel %vm480, %v521, %v544
      %v707 = vsel %vm480, %v522, %v546
      %v708 = vsel %vm480, %v523, %v548
      %v709 = vsel %vm399, %v704, %v565
      %v710 = vsel %vm399, %v705, %v567
      %v711 = vsel %vm399, %v706, %v569
      %v712 = vsel %vm399, %v707, %v571
      %v713 = vsel %vm399, %v708, %v573
      %vm714 = vcmask 97280
      %v715 = vsel %vm714, %v709, %v590
      %v716 = vsel %vm714, %v710, %v592
      %v717 = vsel %vm714, %v711, %v594
      %v718 = vsel %vm714, %v712, %v596
      %v719 = vsel %vm714, %v713, %v598
      %vm720 = vcmask 130048
      %v721 = vsel %vm720, %v715, %v615
      %v722 = vsel %vm720, %v716, %v617
      %v723 = vsel %vm720, %v717, %v619
      %v724 = vsel %vm720, %v718, %v621
      %v725 = vsel %vm720, %v719, %v623
      %vm726 = vcmask 162816
      %v727 = vsel %vm726, %v721, %v640
      %v728 = vsel %vm726, %v722, %v642
      %v729 = vsel %vm726, %v723, %v644
      %v730 = vsel %vm726, %v724, %v646
      %v731 = vsel %vm726, %v725, %v648
      %vm732 = vcmask 195584
      %v733 = vsel %vm732, %v727, %v665
      %v734 = vsel %vm732, %v728, %v667
      %v735 = vsel %vm732, %v729, %v669
      %v736 = vsel %vm732, %v730, %v671
      %v737 = vsel %vm732, %v731, %v673
      %vm738 = vcmask 228352
      %v739 = vsel %vm738, %v733, %v690
      %v740 = vsel %vm738, %v734, %v692
      %v741 = vsel %vm738, %v735, %v694
      %v742 = vsel %vm738, %v736, %v696
      %v743 = vsel %vm738, %v737, %v698
      %v744 = vld [vmem:[%s2] sm:$0xff]
      %v745 = vld [vmem:[%s2 + $0x8] sm:$0xff]
      %v746 = vld [vmem:[%s2 + $0x10] sm:$0xff]
      %v747 = vld [vmem:[%s2 + $0x18] sm:$0xff]
      %v748 = vld [vmem:[%s7] sm:$0x1]
      %v750 = vperm.slane %v748, 0
      %vm752 = vcmask 261120
      %v754 = vsel %vm752, %v739, 0
      %v757 = vsel %vm752, %v740, 0
      %v760 = vsel %vm752, %v741, 0
      %v763 = vsel %vm752, %v742, 0
      %v766 = vsel %vm752, %v743, 0
      %768 = vmatpush.msra.mxu0 0.0
      %769 = vmatpush.msra.mxu0 0.0
      %770 = vmatpush.msra.mxu0 0.0
      %771 = vmatpush.msra.mxu0 0.0
      %772 = vmatpush.msra.mxu0 0.0
      %773 = vmatpush.msra.mxu0 0.0
      %774 = vmatpush.msra.mxu0 0.0
      %775 = vmatpush.msra.mxu0 0.0
      %776 = vmatpush.msra.mxu0 0.0
      %777 = vmatpush.msra.mxu0 0.0
      %778 = vmatpush.msra.mxu0 0.0
      %779 = vmatpush.msra.mxu0 0.0
      %780 = vmatpush.msra.mxu0 %v747
      %781 = vmatpush.msra.mxu0 %v746
      %782 = vmatpush.msra.mxu0 %v745
      %783 = vmatpush.msra.mxu0 %v744
      %784 = vmatmul.f32.gmra.mxu0 %v754
      %v785 = vpop.f32.mrf.mxu0
      %v786 = vadd.f32 %v750, %v785
      %787 = vmatmul.f32.gmra.mxu0 %v757
      %v788 = vpop.f32.mrf.mxu0
      %v789 = vadd.f32 %v750, %v788
      %790 = vmatmul.f32.gmra.mxu0 %v760
      %v791 = vpop.f32.mrf.mxu0
      %v792 = vadd.f32 %v750, %v791
      %793 = vmatmul.f32.gmra.mxu0 %v763
      %v794 = vpop.f32.mrf.mxu0
      %v795 = vadd.f32 %v750, %v794
      %796 = vmatmul.f32.gmra.mxu0 %v766
      %v797 = vpop.f32.mrf.mxu0
      %v798 = vadd.f32 %v750, %v797
      %799 = vdwg.mxu0
      %v800 = vmax.f32 %v786, 0.0
      %v801 = vmax.f32 %v789, 0.0
      %v802 = vmax.f32 %v792, 0.0
      %v803 = vmax.f32 %v795, 0.0
      %v804 = vmax.f32 %v798, 0.0
      %805 = vst.msk [vmem:[#allocation3] sm:$0xff] %vm399, %v800
      %806 = vst.msk [vmem:[#allocation3 + $0x8] sm:$0xff] %vm399, %v801
      %807 = vst.msk [vmem:[#allocation3 + $0x10] sm:$0xff] %vm399, %v802
      %808 = vst.msk [vmem:[#allocation3 + $0x18] sm:$0xff] %vm399, %v803
      %vm809 = vcmask 57344
      %810 = vst.msk [vmem:[#allocation3 + $0x20] sm:$0x1] %vm809, %v804
      %v811 = vld [vmem:[#allocation3] ss:$2 sm:$0xff]
      %s812 = scalar_lea.vmem [#allocation3], 16
      %v813 = vld [vmem:[%s812] ss:$2 sm:$0xff]
      %s814 = scalar_lea.vmem [#allocation3], 1
      %v815 = vld [vmem:[%s814] ss:$2 sm:$0xff]
      %s816 = scalar_lea.vmem [#allocation3], 17
      %v817 = vld [vmem:[%s816] ss:$2 sm:$0xff]
      %v818 = vmax.f32 %v811, %v815
      %v819 = vmax.f32 %v813, %v817
      %820 = vst.msk [vmem:[#allocation7] sm:$0xff] %vm399, 0.0
      %821 = vst.msk [vmem:[#allocation7 + $0x8] sm:$0xff] %vm399, 0.0
      %822 = vst.msk [vmem:[#allocation7 + $0x10] sm:$0xff] %vm399, 0.0
      %823 = vst.msk [vmem:[#allocation7 + $0x4] sm:$0xff] %vm399, %v818
      %824 = vst.msk [vmem:[#allocation7 + $0xc] sm:$0xff] %vm399, %v819
      %v825 = vld [vmem:[#allocation7] sm:$0xff]
      %v826 = vld [vmem:[#allocation7 + $0x8] sm:$0xff]
      %v827 = vld [vmem:[#allocation7 + $0x10] sm:$0xff]
      %v831 = vrot.slane %v825, 1
      %v832 = vrot.slane %v826, 1
      %v833 = vsel %vm529, %v831, %v832
      %v834 = vrot.slane %v827, 1
      %v835 = vsel %vm529, %v832, %v834
      %836 = vrot.lane.b32.xlu0 %v833, 8
      %v837 = vpop.permute.xlu0 %836
      %838 = vrot.lane.b32.xlu0 %v835, 8
      %v839 = vpop.permute.xlu0 %838
      %840 = vrot.lane.b32.xlu0 %v834, 8
      %v841 = vpop.permute.xlu0 %840
      %v845 = vrot.slane %v825, 2
      %v846 = vrot.slane %v826, 2
      %v847 = vsel %vm554, %v845, %v846
      %v848 = vrot.slane %v827, 2
      %v849 = vsel %vm554, %v846, %v848
      %850 = vrot.lane.b32.xlu0 %v847, 16
      %v851 = vpop.permute.xlu0 %850
      %852 = vrot.lane.b32.xlu0 %v849, 16
      %v853 = vpop.permute.xlu0 %852
      %854 = vrot.lane.b32.xlu0 %v848, 16
      %v855 = vpop.permute.xlu0 %854
      %v859 = vrot.slane %v825, 3
      %v860 = vrot.slane %v826, 3
      %v861 = vsel %vm579, %v859, %v860
      %v862 = vrot.slane %v827, 3
      %v863 = vsel %vm579, %v860, %v862
      %864 = vrot.lane.b32.xlu0 %v861, 24
      %v865 = vpop.permute.xlu0 %864
      %866 = vrot.lane.b32.xlu0 %v863, 24
      %v867 = vpop.permute.xlu0 %866
      %868 = vrot.lane.b32.xlu0 %v862, 24
      %v869 = vpop.permute.xlu0 %868
      %v873 = vrot.slane %v825, 4
      %v874 = vrot.slane %v826, 4
      %v875 = vsel %vm604, %v873, %v874
      %v876 = vrot.slane %v827, 4
      %v877 = vsel %vm604, %v874, %v876
      %878 = vrot.lane.b32.xlu0 %v875, 32
      %v879 = vpop.permute.xlu0 %878
      %880 = vrot.lane.b32.xlu0 %v877, 32
      %v881 = vpop.permute.xlu0 %880
      %882 = vrot.lane.b32.xlu0 %v876, 32
      %v883 = vpop.permute.xlu0 %882
      %v887 = vrot.slane %v825, 5
      %v888 = vrot.slane %v826, 5
      %v889 = vsel %vm629, %v887, %v888
      %v890 = vrot.slane %v827, 5
      %v891 = vsel %vm629, %v888, %v890
      %892 = vrot.lane.b32.xlu0 %v889, 40
      %v893 = vpop.permute.xlu0 %892
      %894 = vrot.lane.b32.xlu0 %v891, 40
      %v895 = vpop.permute.xlu0 %894
      %896 = vrot.lane.b32.xlu0 %v890, 40
      %v897 = vpop.permute.xlu0 %896
      %v901 = vrot.slane %v825, 6
      %v902 = vrot.slane %v826, 6
      %v903 = vsel %vm654, %v901, %v902
      %v904 = vrot.slane %v827, 6
      %v905 = vsel %vm654, %v902, %v904
      %906 = vrot.lane.b32.xlu0 %v903, 48
      %v907 = vpop.permute.xlu0 %906
      %908 = vrot.lane.b32.xlu0 %v905, 48
      %v909 = vpop.permute.xlu0 %908
      %910 = vrot.lane.b32.xlu0 %v904, 48
      %v911 = vpop.permute.xlu0 %910
      %v915 = vrot.slane %v825, 7
      %v916 = vrot.slane %v826, 7
      %v917 = vsel %vm679, %v915, %v916
      %v918 = vrot.slane %v827, 7
      %v919 = vsel %vm679, %v916, %v918
      %920 = vrot.lane.b32.xlu0 %v917, 56
      %v921 = vpop.permute.xlu0 %920
      %922 = vrot.lane.b32.xlu0 %v919, 56
      %v923 = vpop.permute.xlu0 %922
      %924 = vrot.lane.b32.xlu0 %v918, 56
      %v925 = vpop.permute.xlu0 %924
      %v929 = vsel %vm399, %v825, %v837
      %v930 = vsel %vm399, %v826, %v839
      %v931 = vsel %vm399, %v827, %v841
      %v932 = vsel %vm720, %v929, %v851
      %v933 = vsel %vm720, %v930, %v853
      %v934 = vsel %vm720, %v931, %v855
      %v935 = vsel %vm732, %v932, %v865
      %v936 = vsel %vm732, %v933, %v867
      %v937 = vsel %vm732, %v934, %v869
      %v938 = vsel %vm752, %v935, %v879
      %v939 = vsel %vm752, %v936, %v881
      %v940 = vsel %vm752, %v937, %v883
      %vm941 = vcmask 326656
      %v942 = vsel %vm941, %v938, %v893
      %v943 = vsel %vm941, %v939, %v895
      %v944 = vsel %vm941, %v940, %v897
      %vm945 = vcmask 392192
      %v946 = vsel %vm945, %v942, %v907
      %v947 = vsel %vm945, %v943, %v909
      %v948 = vsel %vm945, %v944, %v911
      %vm949 = vcmask 457728
      %v950 = vsel %vm949, %v946, %v921
      %v951 = vsel %vm949, %v947, %v923
      %v952 = vsel %vm949, %v948, %v925
      %v953 = vld [vmem:[%s3] sm:$0xff]
      %v954 = vld [vmem:[%s3 + $0x8] sm:$0xff]
      %v955 = vld [vmem:[%s3 + $0x10] sm:$0xff]
      %v956 = vld [vmem:[%s3 + $0x18] sm:$0xff]
      %v957 = vld [vmem:[%s3 + $0x20] sm:$0xff]
      %v958 = vld [vmem:[%s3 + $0x28] sm:$0xff]
      %v959 = vld [vmem:[%s3 + $0x30] sm:$0xff]
      %v960 = vld [vmem:[%s3 + $0x38] sm:$0xff]
      %v961 = vld [vmem:[%s8] sm:$0x1]
      %v963 = vperm.slane %v961, 0
      %vm965 = vcmask 523264
      %v967 = vsel %vm965, %v950, 0
      %v970 = vsel %vm965, %v951, 0
      %v973 = vsel %vm965, %v952, 0
      %975 = vmatpush.msra.mxu0 0.0
      %976 = vmatpush.msra.mxu0 0.0
      %977 = vmatpush.msra.mxu0 0.0
      %978 = vmatpush.msra.mxu0 0.0
      %979 = vmatpush.msra.mxu0 0.0
      %980 = vmatpush.msra.mxu0 0.0
      %981 = vmatpush.msra.mxu0 0.0
      %982 = vmatpush.msra.mxu0 0.0
      %983 = vmatpush.msra.mxu0 %v960
      %984 = vmatpush.msra.mxu0 %v959
      %985 = vmatpush.msra.mxu0 %v958
      %986 = vmatpush.msra.mxu0 %v957
      %987 = vmatpush.msra.mxu0 %v956
      %988 = vmatpush.msra.mxu0 %v955
      %989 = vmatpush.msra.mxu0 %v954
      %990 = vmatpush.msra.mxu0 %v953
      %991 = vmatmul.f32.gmra.mxu0 %v967
      %v992 = vpop.f32.mrf.mxu0
      %v993 = vadd.f32 %v963, %v992
      %994 = vmatmul.f32.gmra.mxu0 %v970
      %v995 = vpop.f32.mrf.mxu0
      %v996 = vadd.f32 %v963, %v995
      %997 = vmatmul.f32.gmra.mxu0 %v973
      %v998 = vpop.f32.mrf.mxu0
      %v999 = vadd.f32 %v963, %v998
      %1000 = vdwg.mxu0
      %v1001 = vmax.f32 %v993, 0.0
      %v1002 = vmax.f32 %v996, 0.0
      %v1003 = vmax.f32 %v999, 0.0
      %1004 = vst.msk [vmem:[#allocation4] sm:$0xff] %vm720, %v1001
      %1005 = vst.msk [vmem:[#allocation4 + $0x8] sm:$0xff] %vm720, %v1002
      %vm1006 = vcmask 122880
      %1007 = vst.msk [vmem:[#allocation4 + $0x10] sm:$0x1] %vm1006, %v1003
      %v1008 = vld [vmem:[#allocation4] ss:$2 sm:$0xff]
      %s1009 = scalar_lea.vmem [#allocation4], 1
      %v1010 = vld [vmem:[%s1009] ss:$2 sm:$0xff]
      %v1011 = vmax.f32 %v1008, %v1010
      %1012 = vst.msk [vmem:[#allocation8] sm:$0xff] %vm720, 0.0
      %1013 = vst.msk [vmem:[#allocation8 + $0x8] sm:$0xff] %vm720, 0.0
      %1014 = vst.msk [vmem:[#allocation8 + $0x4] sm:$0xff] %vm720, %v1011
      %v1015 = vld [vmem:[#allocation8] sm:$0xff]
      %v1016 = vld [vmem:[#allocation8 + $0x8] sm:$0xff]
      %v1019 = vrot.slane %v1015, 1
      %v1020 = vrot.slane %v1016, 1
      %v1021 = vsel %vm529, %v1019, %v1020
      %1022 = vrot.lane.b32.xlu0 %v1021, 16
      %v1023 = vpop.permute.xlu0 %1022
      %1024 = vrot.lane.b32.xlu0 %v1020, 16
      %v1025 = vpop.permute.xlu0 %1024
      %v1028 = vrot.slane %v1015, 2
      %v1029 = vrot.slane %v1016, 2
      %v1030 = vsel %vm554, %v1028, %v1029
      %1031 = vrot.lane.b32.xlu0 %v1030, 32
      %v1032 = vpop.permute.xlu0 %1031
      %1033 = vrot.lane.b32.xlu0 %v1029, 32
      %v1034 = vpop.permute.xlu0 %1033
      %v1037 = vrot.slane %v1015, 3
      %v1038 = vrot.slane %v1016, 3
      %v1039 = vsel %vm579, %v1037, %v1038
      %1040 = vrot.lane.b32.xlu0 %v1039, 48
      %v1041 = vpop.permute.xlu0 %1040
      %1042 = vrot.lane.b32.xlu0 %v1038, 48
      %v1043 = vpop.permute.xlu0 %1042
      %v1046 = vrot.slane %v1015, 4
      %v1047 = vrot.slane %v1016, 4
      %v1048 = vsel %vm604, %v1046, %v1047
      %1049 = vrot.lane.b32.xlu0 %v1048, 64
      %v1050 = vpop.permute.xlu0 %1049
      %1051 = vrot.lane.b32.xlu0 %v1047, 64
      %v1052 = vpop.permute.xlu0 %1051
      %v1055 = vrot.slane %v1015, 5
      %v1056 = vrot.slane %v1016, 5
      %v1057 = vsel %vm629, %v1055, %v1056
      %1058 = vrot.lane.b32.xlu0 %v1057, 80
      %v1059 = vpop.permute.xlu0 %1058
      %1060 = vrot.lane.b32.xlu0 %v1056, 80
      %v1061 = vpop.permute.xlu0 %1060
      %v1064 = vrot.slane %v1015, 6
      %v1065 = vrot.slane %v1016, 6
      %v1066 = vsel %vm654, %v1064, %v1065
      %1067 = vrot.lane.b32.xlu0 %v1066, 96
      %v1068 = vpop.permute.xlu0 %1067
      %1069 = vrot.lane.b32.xlu0 %v1065, 96
      %v1070 = vpop.permute.xlu0 %1069
      %v1073 = vrot.slane %v1015, 7
      %v1074 = vrot.slane %v1016, 7
      %v1075 = vsel %vm679, %v1073, %v1074
      %1076 = vrot.lane.b32.xlu0 %v1075, 112
      %v1077 = vpop.permute.xlu0 %1076
      %1078 = vrot.lane.b32.xlu0 %v1074, 112
      %v1079 = vpop.permute.xlu0 %1078
      %v1082 = vsel %vm720, %v1015, %v1023
      %v1083 = vsel %vm720, %v1016, %v1025
      %v1084 = vsel %vm752, %v1082, %v1032
      %v1085 = vsel %vm752, %v1083, %v1034
      %v1086 = vsel %vm945, %v1084, %v1041
      %v1087 = vsel %vm945, %v1085, %v1043
      %v1088 = vsel %vm965, %v1086, %v1050
      %v1089 = vsel %vm965, %v1087, %v1052
      %vm1090 = vcmask 654336
      %v1091 = vsel %vm1090, %v1088, %v1059
      %v1092 = vsel %vm1090, %v1089, %v1061
      %vm1093 = vcmask 785408
      %v1094 = vsel %vm1093, %v1091, %v1068
      %v1095 = vsel %vm1093, %v1092, %v1070
      %vm1096 = vcmask 916480
      %v1097 = vsel %vm1096, %v1094, %v1077
      %v1098 = vsel %vm1096, %v1095, %v1079
      %v1099 = vld [vmem:[%s4] sm:$0xff]
      %v1100 = vld [vmem:[%s4 + $0x8] sm:$0xff]
      %v1101 = vld [vmem:[%s4 + $0x10] sm:$0xff]
      %v1102 = vld [vmem:[%s4 + $0x18] sm:$0xff]
      %v1103 = vld [vmem:[%s4 + $0x20] sm:$0xff]
      %v1104 = vld [vmem:[%s4 + $0x28] sm:$0xff]
      %v1105 = vld [vmem:[%s4 + $0x30] sm:$0xff]
      %v1106 = vld [vmem:[%s4 + $0x38] sm:$0xff]
      %v1107 = vld [vmem:[%s4 + $0x40] sm:$0xff]
      %v1108 = vld [vmem:[%s4 + $0x48] sm:$0xff]
      %v1109 = vld [vmem:[%s4 + $0x50] sm:$0xff]
      %v1110 = vld [vmem:[%s4 + $0x58] sm:$0xff]
      %v1111 = vld [vmem:[%s4 + $0x60] sm:$0xff]
      %v1112 = vld [vmem:[%s4 + $0x68] sm:$0xff]
      %v1113 = vld [vmem:[%s4 + $0x70] sm:$0xff]
      %v1114 = vld [vmem:[%s4 + $0x78] sm:$0xff]
      %v1115 = vld [vmem:[%s9] sm:$0x1]
      %v1117 = vperm.slane %v1115, 0
      %1119 = vmatpush.msra.mxu0 %v1114
      %1120 = vmatpush.msra.mxu0 %v1113
      %1121 = vmatpush.msra.mxu0 %v1112
      %1122 = vmatpush.msra.mxu0 %v1111
      %1123 = vmatpush.msra.mxu0 %v1110
      %1124 = vmatpush.msra.mxu0 %v1109
      %1125 = vmatpush.msra.mxu0 %v1108
      %1126 = vmatpush.msra.mxu0 %v1107
      %1127 = vmatpush.msra.mxu0 %v1106
      %1128 = vmatpush.msra.mxu0 %v1105
      %1129 = vmatpush.msra.mxu0 %v1104
      %1130 = vmatpush.msra.mxu0 %v1103
      %1131 = vmatpush.msra.mxu0 %v1102
      %1132 = vmatpush.msra.mxu0 %v1101
      %1133 = vmatpush.msra.mxu0 %v1100
      %1134 = vmatpush.msra.mxu0 %v1099
      %1135 = vmatmul.f32.gmra.mxu0 %v1097
      %v1136 = vpop.f32.mrf.mxu0
      %v1137 = vadd.f32 %v1117, %v1136
      %1138 = vmatmul.f32.gmra.mxu0 %v1098
      %v1139 = vpop.f32.mrf.mxu0
      %v1140 = vadd.f32 %v1117, %v1139
      %1141 = vdwg.mxu0
      %v1142 = vmax.f32 %v1137, 0.0
      %v1143 = vmax.f32 %v1140, 0.0
      %1144 = vst.msk [vmem:[#allocation5] sm:$0xff] %vm752, %v1142
      %vm1145 = vcmask 253952
      %1146 = vst.msk [vmem:[#allocation5 + $0x8] sm:$0x1] %vm1145, %v1143
      %v1147 = vld [vmem:[#allocation5] ss:$2 sm:$0xf]
      %s1148 = scalar_lea.vmem [#allocation5], 1
      %v1149 = vld [vmem:[%s1148] ss:$2 sm:$0xf]
      %v1150 = vmax.f32 %v1147, %v1149
      %1151 = vst.msk [vmem:[#allocation9] sm:$0xff] %vm752, 0.0
      %vm1152 = vcmask 257024
      %1153 = vst.msk [vmem:[#allocation9 + $0x8] sm:$0xf] %vm1152, 0.0
      %1154 = vst.msk [vmem:[#allocation9 + $0x4] sm:$0xf] %vm1152, %v1150
      %v1155 = vld [vmem:[#allocation9] sm:$0xff]
      %v1156 = vld [vmem:[#allocation9 + $0x8] sm:$0xf]
      %v1158 = vrot.slane %v1155, 1
      %1159 = vrot.lane.b32.xlu0 %v1158, 32
      %v1160 = vpop.permute.xlu0 %1159
      %v1162 = vrot.slane %v1155, 2
      %1163 = vrot.lane.b32.xlu0 %v1162, 64
      %v1164 = vpop.permute.xlu0 %1163
      %v1166 = vrot.slane %v1155, 3
      %1167 = vrot.lane.b32.xlu0 %v1166, 96
      %v1168 = vpop.permute.xlu0 %1167
      %v1171 = vrot.slane %v1155, 4
      %v1172 = vrot.slane %v1156, 4
      %v1173 = vsel %vm604, %v1171, %v1172
      %v1175 = vrot.slane %v1155, 5
      %v1176 = vrot.slane %v1156, 5
      %v1177 = vsel %vm629, %v1175, %v1176
      %1178 = vrot.lane.b32.xlu0 %v1177, 32
      %v1179 = vpop.permute.xlu0 %1178
      %v1181 = vrot.slane %v1155, 6
      %v1182 = vrot.slane %v1156, 6
      %v1183 = vsel %vm654, %v1181, %v1182
      %1184 = vrot.lane.b32.xlu0 %v1183, 64
      %v1185 = vpop.permute.xlu0 %1184
      %v1187 = vrot.slane %v1155, 7
      %v1188 = vrot.slane %v1156, 7
      %v1189 = vsel %vm679, %v1187, %v1188
      %1190 = vrot.lane.b32.xlu0 %v1189, 96
      %v1191 = vpop.permute.xlu0 %1190
      %v1193 = vsel %vm752, %v1155, %v1160
      %v1194 = vsel %vm965, %v1193, %v1164
      %v1195 = vsel %vm1093, %v1194, %v1168
      %v1196 = vsel %vm752, %v1173, %v1179
      %v1197 = vsel %vm965, %v1196, %v1185
      %v1198 = vsel %vm1093, %v1197, %v1191
      %v1199 = vld [vmem:[%s5] sm:$0xff]
      %v1200 = vld [vmem:[%s5 + $0x8] sm:$0xff]
      %v1201 = vld [vmem:[%s5 + $0x10] sm:$0xff]
      %v1202 = vld [vmem:[%s5 + $0x18] sm:$0xff]
      %v1203 = vld [vmem:[%s5 + $0x20] sm:$0xff]
      %v1204 = vld [vmem:[%s5 + $0x28] sm:$0xff]
      %v1205 = vld [vmem:[%s5 + $0x30] sm:$0xff]
      %v1206 = vld [vmem:[%s5 + $0x38] sm:$0xff]
      %v1207 = vld [vmem:[%s5 + $0x40] sm:$0xff]
      %v1208 = vld [vmem:[%s5 + $0x48] sm:$0xff]
      %v1209 = vld [vmem:[%s5 + $0x50] sm:$0xff]
      %v1210 = vld [vmem:[%s5 + $0x58] sm:$0xff]
      %v1211 = vld [vmem:[%s5 + $0x60] sm:$0xff]
      %v1212 = vld [vmem:[%s5 + $0x68] sm:$0xff]
      %v1213 = vld [vmem:[%s5 + $0x70] sm:$0xff]
      %v1214 = vld [vmem:[%s5 + $0x78] sm:$0xff]
      %v1215 = vld [vmem:[%s5 + $0x80] sm:$0xff]
      %v1216 = vld [vmem:[%s5 + $0x88] sm:$0xff]
      %v1217 = vld [vmem:[%s5 + $0x90] sm:$0xff]
      %v1218 = vld [vmem:[%s5 + $0x98] sm:$0xff]
      %v1219 = vld [vmem:[%s5 + $0xa0] sm:$0xff]
      %v1220 = vld [vmem:[%s5 + $0xa8] sm:$0xff]
      %v1221 = vld [vmem:[%s5 + $0xb0] sm:$0xff]
      %v1222 = vld [vmem:[%s5 + $0xb8] sm:$0xff]
      %v1223 = vld [vmem:[%s5 + $0xc0] sm:$0xff]
      %v1224 = vld [vmem:[%s5 + $0xc8] sm:$0xff]
      %v1225 = vld [vmem:[%s5 + $0xd0] sm:$0xff]
      %v1226 = vld [vmem:[%s5 + $0xd8] sm:$0xff]
      %v1227 = vld [vmem:[%s5 + $0xe0] sm:$0xff]
      %v1228 = vld [vmem:[%s5 + $0xe8] sm:$0xff]
      %v1229 = vld [vmem:[%s5 + $0xf0] sm:$0xff]
      %v1230 = vld [vmem:[%s5 + $0xf8] sm:$0xff]
      %v1231 = vld [vmem:[%s10] sm:$0x1]
      %v1233 = vperm.slane %v1231, 0
      %1235 = vmatpush.msra.mxu0 %v1214
      %1236 = vmatpush.msra.mxu0 %v1213
      %1237 = vmatpush.msra.mxu0 %v1212
      %1238 = vmatpush.msra.mxu0 %v1211
      %1239 = vmatpush.msra.mxu0 %v1210
      %1240 = vmatpush.msra.mxu0 %v1209
      %1241 = vmatpush.msra.mxu0 %v1208
      %1242 = vmatpush.msra.mxu0 %v1207
      %1243 = vmatpush.msra.mxu0 %v1206
      %1244 = vmatpush.msra.mxu0 %v1205
      %1245 = vmatpush.msra.mxu0 %v1204
      %1246 = vmatpush.msra.mxu0 %v1203
      %1247 = vmatpush.msra.mxu0 %v1202
      %1248 = vmatpush.msra.mxu0 %v1201
      %1249 = vmatpush.msra.mxu0 %v1200
      %1250 = vmatpush.msra.mxu0 %v1199
      %1251 = vmatmul.f32.gmra.mxu0 %v1195
      %v1252 = vpop.f32.mrf.mxu0
      %v1253 = vadd.f32 %v1233, %v1252
      %1254 = vdwg.mxu0
      %1255 = vmatpush.msra.mxu0 %v1230
      %1256 = vmatpush.msra.mxu0 %v1229
      %1257 = vmatpush.msra.mxu0 %v1228
      %1258 = vmatpush.msra.mxu0 %v1227
      %1259 = vmatpush.msra.mxu0 %v1226
      %1260 = vmatpush.msra.mxu0 %v1225
      %1261 = vmatpush.msra.mxu0 %v1224
      %1262 = vmatpush.msra.mxu0 %v1223
      %1263 = vmatpush.msra.mxu0 %v1222
      %1264 = vmatpush.msra.mxu0 %v1221
      %1265 = vmatpush.msra.mxu0 %v1220
      %1266 = vmatpush.msra.mxu0 %v1219
      %1267 = vmatpush.msra.mxu0 %v1218
      %1268 = vmatpush.msra.mxu0 %v1217
      %1269 = vmatpush.msra.mxu0 %v1216
      %1270 = vmatpush.msra.mxu0 %v1215
      %1271 = vmatmul.f32.gmra.mxu0 %v1198
      %v1272 = vpop.f32.mrf.mxu0
      %v1273 = vadd.f32 %v1253, %v1272
      %1274 = vdwg.mxu0
      %v1275 = vmax.f32 %v1273, 0.0
      %vm1276 = vcmask 517120
      %v1277 = vsel %vm1276, %v1275, -inf
      %v1278 = vrot.slane %v1277, 4
      %v1279 = vmax.f32 %v1277, %v1278
      %v1280 = vrot.slane %v1279, 2
      %v1281 = vmax.f32 %v1279, %v1280
      %v1282 = vrot.slane %v1281, 1
      %v1283 = vmax.f32 %v1281, %v1282
      %vm1284 = vcmask 518145
      %v1285 = vsel %vm1284, %v1275, -inf
      %v1286 = vrot.slane %v1285, 4
      %v1287 = vmax.f32 %v1285, %v1286
      %v1288 = vrot.slane %v1287, 2
      %v1289 = vmax.f32 %v1287, %v1288
      %v1290 = vrot.slane %v1289, 1
      %v1291 = vmax.f32 %v1289, %v1290
      %vm1292 = vcmask 519170
      %v1293 = vsel %vm1292, %v1275, -inf
      %v1294 = vrot.slane %v1293, 4
      %v1295 = vmax.f32 %v1293, %v1294
      %v1296 = vrot.slane %v1295, 2
      %v1297 = vmax.f32 %v1295, %v1296
      %v1298 = vrot.slane %v1297, 1
      %v1299 = vmax.f32 %v1297, %v1298
      %vm1300 = vcmask 520195
      %v1301 = vsel %vm1300, %v1275, -inf
      %v1302 = vrot.slane %v1301, 4
      %v1303 = vmax.f32 %v1301, %v1302
      %v1304 = vrot.slane %v1303, 2
      %v1305 = vmax.f32 %v1303, %v1304
      %v1306 = vrot.slane %v1305, 1
      %v1307 = vmax.f32 %v1305, %v1306
      %v1308 = vsel %vm679, %v1283, %v1291
      %v1309 = vsel %vm654, %v1308, %v1299
      %v1310 = vsel %vm629, %v1309, %v1307
      %vm1311 = vcmask 519168
      %1312 = vst.msk [vmem:[%s384] sm:$0xf] %vm1311, %v1310
      %p1313 = scmp.lt.s32.totalorder %s22, 1
      %s1314 = scalar_select %p1313, %s22, 1
      %s1315 = smul.addr %s1314, 4
      %s1316 = scalar_lea.vmem %s11, %s1315
      // Predicated region
      $region65: #{cnnlayer_forward.1} parent=63 // pred_check
        %p1317 = pneg %p276
      $region66: #{cnnlayer_forward.1} parent=63 // pred_check_branch
        %1319 = sbr.rel (%p1317) target = $region68
      $region67: #{cnnlayer_forward.1} parent=63 // pred_region
        _
      $region68: #{cnnlayer_forward.1} parent=63 // pred_fallthru
        _
    $region64: #{cnnlayer_forward.1} parent=5 // pred_fallthru
      _
    %p1320 = scmp.le.s32.totalorder 2, %s17
    // Predicated region
    $region69: #{cnnlayer_forward.1} parent=5 // pred_check
      %p1321 = pneg %p1320
    $region70: #{cnnlayer_forward.1} parent=5 // pred_check_branch
      %1323 = sbr.rel (%p1321) target = $region72
    $region71: #{cnnlayer_forward.1} parent=5 // pred_region
      %s1324 = ssub.s32 %s17, 2
      // Predicated region
      $region73: #{cnnlayer_forward.1} parent=71 // pred_check
        %p1325 = pneg %p282
      $region74: #{cnnlayer_forward.1} parent=71 // pred_check_branch
        %1327 = sbr.rel (%p1325) target = $region76
      $region75: #{cnnlayer_forward.1} parent=71 // pred_region
        %p1328 = scmp.lt.s32.totalorder %s23, 1
        %s1329 = scalar_select %p1328, %s23, 1
        %s1330 = smul.addr %s1329, 4
        %s1331 = scalar_lea.vmem %s11, %s1330
      $region76: #{cnnlayer_forward.1} parent=71 // pred_fallthru
        _
    $region72: #{cnnlayer_forward.1} parent=5 // pred_fallthru
      _
  $region6: #{cnnlayer_forward.1} parent=0 // loop_footer
    %s21 = sadd.s32 1, %s17
  $region7: #{cnnlayer_forward.1} parent=0 // loop_footer_branch
    %16 = sbr.rel target = $region3
  $region8: #{cnnlayer_forward.1} parent=0 // loop_exit
    _

</llo_original>
